<compile_context>
chip_gen: v5e
topology: v5e:2x2
jax: 0.10.0
libtpu: 0.0.40
codegen_flags: <defaults>
</compile_context>

<pallas_src>
import functools

import jax
import jax.numpy as jnp
from jax.experimental import pallas as pl
from jax.experimental.pallas import tpu as pltpu


def _round_up(x, m):
    return (x + m - 1) // m * m


def _vmem_limit_bytes():
    # Generation-aware scoped-VMEM limit: raise the 16/32 MiB defaults but stay
    # well below physical VMEM (v7x TC has only 64 MiB -> ~48 MiB cap).
    try:
        cap = int(pltpu.get_tpu_info().vmem_capacity_bytes)
        return max(32 << 20, min((cap * 3) // 4, 96 << 20))
    except Exception:
        return 48 << 20


def _fused_conv_kernel(x_ref, w1_ref, b1_ref, w2_ref, b2_ref, w3_ref, b3_ref,
                       mask_ref, o_ref, ybuf_ref, hbuf_ref,
                       *, Cout, Wp, LP, LM, M):
    """Fused 3x(3x3 conv) + residual + ReLU for one batch image.

    Layouts (spatial on the lane axis):
      * padded-flat frame: length LP = round_up(Hp*Wp, 128); position
        k = i*Wp + j <-> padded pixel (i, j).
      * margin-extended buffers (x_ref, ybuf, hbuf): length LE = 2*LM + LP;
        buffer position LM + k holds padded-flat position k, margins are zero.
        Tap (dh, dw) of a 3x3 conv is the static lane slice
        [LM - M + dh*Wp + dw, ... + LP) of that buffer (M = Wp + 1).
    Correctness of the flat-shift trick holds only at interior output
    positions; border/tail positions are zeroed by `mask` (for y/h feeding the
    next conv) and cropped by the wrapper (for the final output).
    """
    f32 = jnp.float32
    mask = mask_ref[...]                              # (1, LP) f32 interior mask

    # Zero only the halo margins of the intermediate buffers; the [LM, LM+LP)
    # interior (including the frame tail) is fully overwritten by the masked
    # store below.  Both margins are 128-lane aligned full-width stores.
    zmargin = jnp.zeros((Cout, LM), ybuf_ref.dtype)
    ybuf_ref[:, :LM] = zmargin
    ybuf_ref[:, LM + LP:] = zmargin
    hbuf_ref[:, :LM] = zmargin
    hbuf_ref[:, LM + LP:] = zmargin

    def conv3x3(src_ref, w_ref, b_ref):
        # 9 shifted bf16 matmuls accumulated in f32 (no im2col buffer).
        acc = None
        for dh in range(3):
            for dw in range(3):
                t = dh * 3 + dw
                off = LM - M + dh * Wp + dw           # static lane offset
                part = jnp.dot(w_ref[t], src_ref[:, off:off + LP],
                               preferred_element_type=f32)
                acc = part if acc is None else acc + part
        return acc + b_ref[...]                       # (Cout, LP) f32

    # ---- layer1: y = ReLU(conv1(x) + b1), zero outside the interior --------
    y = jnp.maximum(conv3x3(x_ref, w1_ref, b1_ref), 0.0) * mask
    ybuf_ref[:, LM:LM + LP] = y.astype(ybuf_ref.dtype)    # aligned bf16 store

    # ---- layer2[0:2]: h = ReLU(conv2(y) + b2) -------------------------------
    h = jnp.maximum(conv3x3(ybuf_ref, w2_ref, b2_ref), 0.0) * mask
    hbuf_ref[:, LM:LM + LP] = h.astype(hbuf_ref.dtype)

    # ---- layer2[2] + residual + layer3: out = ReLU(y + conv3(h) + b3) -------
    z = conv3x3(hbuf_ref, w3_ref, b3_ref)
    y_back = ybuf_ref[:, LM:LM + LP].astype(f32)           # re-read (no long live range)
    o_ref[...] = jnp.maximum(y_back + z, 0.0).astype(o_ref.dtype)  # lane-dense vst


def conv_block_forward(params, x_nchw):
    """Forward pass of the PyTorch `Conv` module.  Input/output are NCHW f32."""
    N, Cin, H, W = x_nchw.shape
    Cout = params["w1"].shape[-1]
    Hp, Wp = H + 2, W + 2
    M = Wp + 1                        # max halo reach of one 3x3 tap (flat index)
    LM = _round_up(M, 128)            # lane-tile-aligned margin
    LP = _round_up(Hp * Wp, 128)      # lane-dense padded-flat frame length
    LE = 2 * LM + LP                  # margin-extended buffer length
    bf16 = jnp.bfloat16

    # Margin-extended, padded, flattened input (channel-major), bf16 for the MXU.
    xp = jnp.pad(x_nchw, ((0, 0), (0, 0), (1, 1), (1, 1)))          # (N,Cin,Hp,Wp)
    xbuf = jnp.pad(xp.reshape(N, Cin, Hp * Wp),
                   ((0, 0), (0, 0), (LM, LE - LM - Hp * Wp))).astype(bf16)

    # Per-tap weight matrices (9, Cout, Cin) bf16; biases stay f32 (VPU math).
    def prep_w(w):
        ci, co = w.shape[2], w.shape[3]
        return jnp.transpose(w, (0, 1, 3, 2)).reshape(9, co, ci).astype(bf16)

    w1, w2, w3 = prep_w(params["w1"]), prep_w(params["w2"]), prep_w(params["w3"])
    b1 = params["b1"].reshape(Cout, 1).astype(jnp.float32)
    b2 = params["b2"].reshape(Cout, 1).astype(jnp.float32)
    b3 = params["b3"].reshape(Cout, 1).astype(jnp.float32)

    # Interior mask over the padded-flat frame (zero on padded border + tail).
    idx = jnp.arange(LP)
    row, col = idx // Wp, idx % Wp
    interior = ((idx < Hp * Wp) & (row >= 1) & (row <= Hp - 2)
                & (col >= 1) & (col <= Wp - 2))
    mask = interior.astype(jnp.float32).reshape(1, LP)

    kernel = functools.partial(_fused_conv_kernel, Cout=Cout, Wp=Wp, LP=LP,
                               LM=LM, M=M)

    # Resident operands (constant index maps): single-buffered.
    resident = dict(pipeline_mode=pl.Buffered(1))

    flops = 2 * N * H * W * 9 * (Cin * Cout + 2 * Cout * Cout)
    bytes_accessed = (2 * N * Cin * LE + 4 * N * Cout * LP
                      + 2 * 9 * Cout * (Cin + 2 * Cout) + 4 * (3 * Cout + LP))

    out_flat = pl.pallas_call(
        kernel,
        out_shape=jax.ShapeDtypeStruct((N, Cout, LP), x_nchw.dtype),
        grid=(N,),
        in_specs=[
            pl.BlockSpec((None, Cin, LE), lambda n: (n, 0, 0)),       # per-batch image
            pl.BlockSpec((9, Cout, Cin), lambda n: (0, 0, 0), **resident),
            pl.BlockSpec((Cout, 1), lambda n: (0, 0), **resident),
            pl.BlockSpec((9, Cout, Cout), lambda n: (0, 0, 0), **resident),
            pl.BlockSpec((Cout, 1), lambda n: (0, 0), **resident),
            pl.BlockSpec((9, Cout, Cout), lambda n: (0, 0, 0), **resident),
            pl.BlockSpec((Cout, 1), lambda n: (0, 0), **resident),
            pl.BlockSpec((1, LP), lambda n: (0, 0), **resident),      # interior mask
        ],
        out_specs=pl.BlockSpec((None, Cout, LP), lambda n: (n, 0, 0)),
        scratch_shapes=[
            pltpu.VMEM((Cout, LE), bf16),     # padded y (VMEM-resident, bf16)
            pltpu.VMEM((Cout, LE), bf16),     # padded h (VMEM-resident, bf16)
        ],
        compiler_params=pltpu.CompilerParams(
            dimension_semantics=("parallel",),
            vmem_limit_bytes=_vmem_limit_bytes(),
        ),
        cost_estimate=pl.CostEstimate(flops=flops, transcendentals=0,
                                      bytes_accessed=bytes_accessed),
    )(xbuf, w1, b1, w2, b2, w3, b3, mask)

    # Interior crop of the padded-flat frame -> NCHW (kept here for a
    # standalone module; fuse into the consumer when embedded in the U-Net).
    out = out_flat[:, :, :Hp * Wp].reshape(N, Cout, Hp, Wp)[:, :, 1:1 + H, 1:1 + W]
    return out


def init_conv_params(key, C_in, C_out, dtype=jnp.float32):
    """Deterministic parameter init (PyTorch-like uniform fan-in scaling)."""
    ks = jax.random.split(key, 6)

    def conv_wb(kw, kb, cin, cout):
        bound = 1.0 / jnp.sqrt(cin * 9.0)
        w = jax.random.uniform(kw, (3, 3, cin, cout), dtype,
                               minval=-bound, maxval=bound)
        b = jax.random.uniform(kb, (cout,), dtype, minval=-bound, maxval=bound)
        return w, b

    w1, b1 = conv_wb(ks[0], ks[1], C_in, C_out)
    w2, b2 = conv_wb(ks[2], ks[3], C_out, C_out)
    w3, b3 = conv_wb(ks[4], ks[5], C_out, C_out)
    return {"w1": w1, "b1": b1, "w2": w2, "b2": b2, "w3": w3, "b3": b3}


def _reference_forward(params, x_nchw):
    """Pure-JAX f32 reference (lax.conv) for a correctness sanity check."""
    def conv(x, w, b):
        out = jax.lax.conv_general_dilated(
            x, w, window_strides=(1, 1), padding=((1, 1), (1, 1)),
            dimension_numbers=("NCHW", "HWIO", "NCHW"))
        return out + b.reshape(1, -1, 1, 1)

    y = jax.nn.relu(conv(x_nchw, params["w1"], params["b1"]))
    z = conv(jax.nn.relu(conv(y, params["w2"], params["b2"])),
             params["w3"], params["b3"])
    return jax.nn.relu(y + z)


if __name__ == "__main__":
    key = jax.random.PRNGKey(0)
    k_param, k_x = jax.random.split(key)

    N, C_in, C_out, H, W = 2, 4, 8, 16, 16
    params = init_conv_params(k_param, C_in, C_out)
    x = jax.random.normal(k_x, (N, C_in, H, W), jnp.float32)

    out = jax.block_until_ready(conv_block_forward(params, x))

    ref = _reference_forward(params, x)
    assert out.shape == (N, C_out, H, W)
    # bf16 MXU inputs (f32 accumulation) -> looser tolerance vs f32 reference.
    assert jnp.allclose(out, ref, atol=5e-2, rtol=5e-2)

    print("KERNEL_OK")
</pallas_src>

<mosaic_0001>
module attributes {stable_mosaic.version = 11 : i64} {
  func.func @_fused_conv_kernel(%arg0: i32, %arg1: memref<1x4x640xbf16, #tpu.memory_space<vmem>>, %arg2: memref<9x8x4xbf16, #tpu.memory_space<vmem>>, %arg3: memref<8x1xf32, #tpu.memory_space<vmem>>, %arg4: memref<9x8x8xbf16, #tpu.memory_space<vmem>>, %arg5: memref<8x1xf32, #tpu.memory_space<vmem>>, %arg6: memref<9x8x8xbf16, #tpu.memory_space<vmem>>, %arg7: memref<8x1xf32, #tpu.memory_space<vmem>>, %arg8: memref<1x384xf32, #tpu.memory_space<vmem>>, %arg9: memref<1x8x384xf32, #tpu.memory_space<vmem>>, %arg10: memref<8x640xbf16, #tpu.memory_space<vmem>>, %arg11: memref<8x640xbf16, #tpu.memory_space<vmem>>) attributes {dimension_semantics = [#tpu.dimension_semantics<parallel>], iteration_bounds = array<i64: 2>, scalar_prefetch = 0 : i64, scratch_operands = 2 : i64, tpu.core_type = #tpu.core_type<tc>, window_params = [{transform_indices = @transform_0, window_bounds = array<i64: 1, 4, 640>}, {pipeline_mode = #tpu.pipeline_mode<synchronous>, transform_indices = @transform_1, window_bounds = array<i64: 9, 8, 4>}, {pipeline_mode = #tpu.pipeline_mode<synchronous>, transform_indices = @transform_2, window_bounds = array<i64: 8, 1>}, {pipeline_mode = #tpu.pipeline_mode<synchronous>, transform_indices = @transform_3, window_bounds = array<i64: 9, 8, 8>}, {pipeline_mode = #tpu.pipeline_mode<synchronous>, transform_indices = @transform_4, window_bounds = array<i64: 8, 1>}, {pipeline_mode = #tpu.pipeline_mode<synchronous>, transform_indices = @transform_5, window_bounds = array<i64: 9, 8, 8>}, {pipeline_mode = #tpu.pipeline_mode<synchronous>, transform_indices = @transform_6, window_bounds = array<i64: 8, 1>}, {pipeline_mode = #tpu.pipeline_mode<synchronous>, transform_indices = @transform_7, window_bounds = array<i64: 1, 384>}, {transform_indices = @transform_8, window_bounds = array<i64: 1, 8, 384>}]} {
    %c0 = arith.constant 0 : index
    %c0_0 = arith.constant 0 : index
    %0 = vector.load %arg8[%c0, %c0_0] : memref<1x384xf32, #tpu.memory_space<vmem>>, vector<1x384xf32>
    %cst = arith.constant 0.000000e+00 : bf16
    %1 = vector.broadcast %cst : bf16 to vector<8x128xbf16>
    %c0_1 = arith.constant 0 : index
    %c0_2 = arith.constant 0 : index
    %2 = vector.load %arg10[%c0_1, %c0_2] : memref<8x640xbf16, #tpu.memory_space<vmem>>, vector<8x128xbf16>
    tpu.vector_store %arg10[%c0_1, %c0_2], %1 {strides = array<i32>} : memref<8x640xbf16, #tpu.memory_space<vmem>>, vector<8x128xbf16>,
    %c0_3 = arith.constant 0 : index
    %c512 = arith.constant 512 : index
    %3 = vector.load %arg10[%c0_3, %c512] : memref<8x640xbf16, #tpu.memory_space<vmem>>, vector<8x128xbf16>
    tpu.vector_store %arg10[%c0_3, %c512], %1 {strides = array<i32>} : memref<8x640xbf16, #tpu.memory_space<vmem>>, vector<8x128xbf16>,
    %c0_4 = arith.constant 0 : index
    %c0_5 = arith.constant 0 : index
    %4 = vector.load %arg11[%c0_4, %c0_5] : memref<8x640xbf16, #tpu.memory_space<vmem>>, vector<8x128xbf16>
    tpu.vector_store %arg11[%c0_4, %c0_5], %1 {strides = array<i32>} : memref<8x640xbf16, #tpu.memory_space<vmem>>, vector<8x128xbf16>,
    %c0_6 = arith.constant 0 : index
    %c512_7 = arith.constant 512 : index
    %5 = vector.load %arg11[%c0_6, %c512_7] : memref<8x640xbf16, #tpu.memory_space<vmem>>, vector<8x128xbf16>
    tpu.vector_store %arg11[%c0_6, %c512_7], %1 {strides = array<i32>} : memref<8x640xbf16, #tpu.memory_space<vmem>>, vector<8x128xbf16>,
    %c0_8 = arith.constant 0 : index
    %c0_9 = arith.constant 0 : index
    %c0_10 = arith.constant 0 : index
    %6 = vector.load %arg2[%c0_8, %c0_9, %c0_10] : memref<9x8x4xbf16, #tpu.memory_space<vmem>>, vector<1x8x4xbf16>
    %7 = vector.shape_cast %6 : vector<1x8x4xbf16> to vector<8x4xbf16>
    %c0_11 = arith.constant 0 : index
    %c0_12 = arith.constant 0 : index
    %c109 = arith.constant 109 : index
    %8 = vector.load %arg1[%c0_11, %c0_12, %c109] : memref<1x4x640xbf16, #tpu.memory_space<vmem>>, vector<1x4x384xbf16>
    %9 = vector.shape_cast %8 : vector<1x4x384xbf16> to vector<4x384xbf16>
    %cst_13 = arith.constant dense<0.000000e+00> : vector<8x384xf32>
    %10 = tpu.matmul %7, %9, %cst_13 {dimension_numbers = #tpu.dot_dimension_numbers<[1], [0], [0], [1], [0, 0, 1, 1], [], []>} : vector<8x4xbf16>, vector<4x384xbf16>, vector<8x384xf32> -> vector<8x384xf32>
    %c1 = arith.constant 1 : index
    %c0_14 = arith.constant 0 : index
    %c0_15 = arith.constant 0 : index
    %11 = vector.load %arg2[%c1, %c0_14, %c0_15] : memref<9x8x4xbf16, #tpu.memory_space<vmem>>, vector<1x8x4xbf16>
    %12 = vector.shape_cast %11 : vector<1x8x4xbf16> to vector<8x4xbf16>
    %c0_16 = arith.constant 0 : index
    %c0_17 = arith.constant 0 : index
    %c110 = arith.constant 110 : index
    %13 = vector.load %arg1[%c0_16, %c0_17, %c110] : memref<1x4x640xbf16, #tpu.memory_space<vmem>>, vector<1x4x384xbf16>
    %14 = vector.shape_cast %13 : vector<1x4x384xbf16> to vector<4x384xbf16>
    %cst_18 = arith.constant dense<0.000000e+00> : vector<8x384xf32>
    %15 = tpu.matmul %12, %14, %cst_18 {dimension_numbers = #tpu.dot_dimension_numbers<[1], [0], [0], [1], [0, 0, 1, 1], [], []>} : vector<8x4xbf16>, vector<4x384xbf16>, vector<8x384xf32> -> vector<8x384xf32>
    %16 = arith.addf %10, %15 : vector<8x384xf32>
    %c2 = arith.constant 2 : index
    %c0_19 = arith.constant 0 : index
    %c0_20 = arith.constant 0 : index
    %17 = vector.load %arg2[%c2, %c0_19, %c0_20] : memref<9x8x4xbf16, #tpu.memory_space<vmem>>, vector<1x8x4xbf16>
    %18 = vector.shape_cast %17 : vector<1x8x4xbf16> to vector<8x4xbf16>
    %c0_21 = arith.constant 0 : index
    %c0_22 = arith.constant 0 : index
    %c111 = arith.constant 111 : index
    %19 = vector.load %arg1[%c0_21, %c0_22, %c111] : memref<1x4x640xbf16, #tpu.memory_space<vmem>>, vector<1x4x384xbf16>
    %20 = vector.shape_cast %19 : vector<1x4x384xbf16> to vector<4x384xbf16>
    %cst_23 = arith.constant dense<0.000000e+00> : vector<8x384xf32>
    %21 = tpu.matmul %18, %20, %cst_23 {dimension_numbers = #tpu.dot_dimension_numbers<[1], [0], [0], [1], [0, 0, 1, 1], [], []>} : vector<8x4xbf16>, vector<4x384xbf16>, vector<8x384xf32> -> vector<8x384xf32>
    %22 = arith.addf %16, %21 : vector<8x384xf32>
    %c3 = arith.constant 3 : index
    %c0_24 = arith.constant 0 : index
    %c0_25 = arith.constant 0 : index
    %23 = vector.load %arg2[%c3, %c0_24, %c0_25] : memref<9x8x4xbf16, #tpu.memory_space<vmem>>, vector<1x8x4xbf16>
    %24 = vector.shape_cast %23 : vector<1x8x4xbf16> to vector<8x4xbf16>
    %c0_26 = arith.constant 0 : index
    %c0_27 = arith.constant 0 : index
    %c127 = arith.constant 127 : index
    %25 = vector.load %arg1[%c0_26, %c0_27, %c127] : memref<1x4x640xbf16, #tpu.memory_space<vmem>>, vector<1x4x384xbf16>
    %26 = vector.shape_cast %25 : vector<1x4x384xbf16> to vector<4x384xbf16>
    %cst_28 = arith.constant dense<0.000000e+00> : vector<8x384xf32>
    %27 = tpu.matmul %24, %26, %cst_28 {dimension_numbers = #tpu.dot_dimension_numbers<[1], [0], [0], [1], [0, 0, 1, 1], [], []>} : vector<8x4xbf16>, vector<4x384xbf16>, vector<8x384xf32> -> vector<8x384xf32>
    %28 = arith.addf %22, %27 : vector<8x384xf32>
    %c4 = arith.constant 4 : index
    %c0_29 = arith.constant 0 : index
    %c0_30 = arith.constant 0 : index
    %29 = vector.load %arg2[%c4, %c0_29, %c0_30] : memref<9x8x4xbf16, #tpu.memory_space<vmem>>, vector<1x8x4xbf16>
    %30 = vector.shape_cast %29 : vector<1x8x4xbf16> to vector<8x4xbf16>
    %c0_31 = arith.constant 0 : index
    %c0_32 = arith.constant 0 : index
    %c128 = arith.constant 128 : index
    %31 = vector.load %arg1[%c0_31, %c0_32, %c128] : memref<1x4x640xbf16, #tpu.memory_space<vmem>>, vector<1x4x384xbf16>
    %32 = vector.shape_cast %31 : vector<1x4x384xbf16> to vector<4x384xbf16>
    %cst_33 = arith.constant dense<0.000000e+00> : vector<8x384xf32>
    %33 = tpu.matmul %30, %32, %cst_33 {dimension_numbers = #tpu.dot_dimension_numbers<[1], [0], [0], [1], [0, 0, 1, 1], [], []>} : vector<8x4xbf16>, vector<4x384xbf16>, vector<8x384xf32> -> vector<8x384xf32>
    %34 = arith.addf %28, %33 : vector<8x384xf32>
    %c5 = arith.constant 5 : index
    %c0_34 = arith.constant 0 : index
    %c0_35 = arith.constant 0 : index
    %35 = vector.load %arg2[%c5, %c0_34, %c0_35] : memref<9x8x4xbf16, #tpu.memory_space<vmem>>, vector<1x8x4xbf16>
    %36 = vector.shape_cast %35 : vector<1x8x4xbf16> to vector<8x4xbf16>
    %c0_36 = arith.constant 0 : index
    %c0_37 = arith.constant 0 : index
    %c129 = arith.constant 129 : index
    %37 = vector.load %arg1[%c0_36, %c0_37, %c129] : memref<1x4x640xbf16, #tpu.memory_space<vmem>>, vector<1x4x384xbf16>
    %38 = vector.shape_cast %37 : vector<1x4x384xbf16> to vector<4x384xbf16>
    %cst_38 = arith.constant dense<0.000000e+00> : vector<8x384xf32>
    %39 = tpu.matmul %36, %38, %cst_38 {dimension_numbers = #tpu.dot_dimension_numbers<[1], [0], [0], [1], [0, 0, 1, 1], [], []>} : vector<8x4xbf16>, vector<4x384xbf16>, vector<8x384xf32> -> vector<8x384xf32>
    %40 = arith.addf %34, %39 : vector<8x384xf32>
    %c6 = arith.constant 6 : index
    %c0_39 = arith.constant 0 : index
    %c0_40 = arith.constant 0 : index
    %41 = vector.load %arg2[%c6, %c0_39, %c0_40] : memref<9x8x4xbf16, #tpu.memory_space<vmem>>, vector<1x8x4xbf16>
    %42 = vector.shape_cast %41 : vector<1x8x4xbf16> to vector<8x4xbf16>
    %c0_41 = arith.constant 0 : index
    %c0_42 = arith.constant 0 : index
    %c145 = arith.constant 145 : index
    %43 = vector.load %arg1[%c0_41, %c0_42, %c145] : memref<1x4x640xbf16, #tpu.memory_space<vmem>>, vector<1x4x384xbf16>
    %44 = vector.shape_cast %43 : vector<1x4x384xbf16> to vector<4x384xbf16>
    %cst_43 = arith.constant dense<0.000000e+00> : vector<8x384xf32>
    %45 = tpu.matmul %42, %44, %cst_43 {dimension_numbers = #tpu.dot_dimension_numbers<[1], [0], [0], [1], [0, 0, 1, 1], [], []>} : vector<8x4xbf16>, vector<4x384xbf16>, vector<8x384xf32> -> vector<8x384xf32>
    %46 = arith.addf %40, %45 : vector<8x384xf32>
    %c7 = arith.constant 7 : index
    %c0_44 = arith.constant 0 : index
    %c0_45 = arith.constant 0 : index
    %47 = vector.load %arg2[%c7, %c0_44, %c0_45] : memref<9x8x4xbf16, #tpu.memory_space<vmem>>, vector<1x8x4xbf16>
    %48 = vector.shape_cast %47 : vector<1x8x4xbf16> to vector<8x4xbf16>
    %c0_46 = arith.constant 0 : index
    %c0_47 = arith.constant 0 : index
    %c146 = arith.constant 146 : index
    %49 = vector.load %arg1[%c0_46, %c0_47, %c146] : memref<1x4x640xbf16, #tpu.memory_space<vmem>>, vector<1x4x384xbf16>
    %50 = vector.shape_cast %49 : vector<1x4x384xbf16> to vector<4x384xbf16>
    %cst_48 = arith.constant dense<0.000000e+00> : vector<8x384xf32>
    %51 = tpu.matmul %48, %50, %cst_48 {dimension_numbers = #tpu.dot_dimension_numbers<[1], [0], [0], [1], [0, 0, 1, 1], [], []>} : vector<8x4xbf16>, vector<4x384xbf16>, vector<8x384xf32> -> vector<8x384xf32>
    %52 = arith.addf %46, %51 : vector<8x384xf32>
    %c8 = arith.constant 8 : index
    %c0_49 = arith.constant 0 : index
    %c0_50 = arith.constant 0 : index
    %53 = vector.load %arg2[%c8, %c0_49, %c0_50] : memref<9x8x4xbf16, #tpu.memory_space<vmem>>, vector<1x8x4xbf16>
    %54 = vector.shape_cast %53 : vector<1x8x4xbf16> to vector<8x4xbf16>
    %c0_51 = arith.constant 0 : index
    %c0_52 = arith.constant 0 : index
    %c147 = arith.constant 147 : index
    %55 = vector.load %arg1[%c0_51, %c0_52, %c147] : memref<1x4x640xbf16, #tpu.memory_space<vmem>>, vector<1x4x384xbf16>
    %56 = vector.shape_cast %55 : vector<1x4x384xbf16> to vector<4x384xbf16>
    %cst_53 = arith.constant dense<0.000000e+00> : vector<8x384xf32>
    %57 = tpu.matmul %54, %56, %cst_53 {dimension_numbers = #tpu.dot_dimension_numbers<[1], [0], [0], [1], [0, 0, 1, 1], [], []>} : vector<8x4xbf16>, vector<4x384xbf16>, vector<8x384xf32> -> vector<8x384xf32>
    %58 = arith.addf %52, %57 : vector<8x384xf32>
    %c0_54 = arith.constant 0 : index
    %c0_55 = arith.constant 0 : index
    %59 = vector.load %arg3[%c0_54, %c0_55] : memref<8x1xf32, #tpu.memory_space<vmem>>, vector<8x1xf32>
    %60 = vector.broadcast %59 : vector<8x1xf32> to vector<8x384xf32>
    %61 = arith.addf %58, %60 : vector<8x384xf32>
    %cst_56 = arith.constant 0.000000e+00 : f32
    %62 = vector.broadcast %cst_56 : f32 to vector<8x384xf32>
    %63 = arith.maximumf %61, %62 : vector<8x384xf32>
    %64 = vector.broadcast %0 : vector<1x384xf32> to vector<8x384xf32>
    %65 = arith.mulf %63, %64 : vector<8x384xf32>
    %66 = arith.truncf %65 : vector<8x384xf32> to vector<8x384xbf16>
    %c0_57 = arith.constant 0 : index
    %c128_58 = arith.constant 128 : index
    %67 = vector.load %arg10[%c0_57, %c128_58] : memref<8x640xbf16, #tpu.memory_space<vmem>>, vector<8x384xbf16>
    tpu.vector_store %arg10[%c0_57, %c128_58], %66 {strides = array<i32>} : memref<8x640xbf16, #tpu.memory_space<vmem>>, vector<8x384xbf16>,
    %c0_59 = arith.constant 0 : index
    %c0_60 = arith.constant 0 : index
    %c0_61 = arith.constant 0 : index
    %68 = vector.load %arg4[%c0_59, %c0_60, %c0_61] : memref<9x8x8xbf16, #tpu.memory_space<vmem>>, vector<1x8x8xbf16>
    %69 = vector.shape_cast %68 : vector<1x8x8xbf16> to vector<8x8xbf16>
    %c0_62 = arith.constant 0 : index
    %c109_63 = arith.constant 109 : index
    %70 = vector.load %arg10[%c0_62, %c109_63] : memref<8x640xbf16, #tpu.memory_space<vmem>>, vector<8x384xbf16>
    %cst_64 = arith.constant dense<0.000000e+00> : vector<8x384xf32>
    %71 = tpu.matmul %69, %70, %cst_64 {dimension_numbers = #tpu.dot_dimension_numbers<[1], [0], [0], [1], [0, 0, 1, 1], [], []>} : vector<8x8xbf16>, vector<8x384xbf16>, vector<8x384xf32> -> vector<8x384xf32>
    %c1_65 = arith.constant 1 : index
    %c0_66 = arith.constant 0 : index
    %c0_67 = arith.constant 0 : index
    %72 = vector.load %arg4[%c1_65, %c0_66, %c0_67] : memref<9x8x8xbf16, #tpu.memory_space<vmem>>, vector<1x8x8xbf16>
    %73 = vector.shape_cast %72 : vector<1x8x8xbf16> to vector<8x8xbf16>
    %c0_68 = arith.constant 0 : index
    %c110_69 = arith.constant 110 : index
    %74 = vector.load %arg10[%c0_68, %c110_69] : memref<8x640xbf16, #tpu.memory_space<vmem>>, vector<8x384xbf16>
    %cst_70 = arith.constant dense<0.000000e+00> : vector<8x384xf32>
    %75 = tpu.matmul %73, %74, %cst_70 {dimension_numbers = #tpu.dot_dimension_numbers<[1], [0], [0], [1], [0, 0, 1, 1], [], []>} : vector<8x8xbf16>, vector<8x384xbf16>, vector<8x384xf32> -> vector<8x384xf32>
    %76 = arith.addf %71, %75 : vector<8x384xf32>
    %c2_71 = arith.constant 2 : index
    %c0_72 = arith.constant 0 : index
    %c0_73 = arith.constant 0 : index
    %77 = vector.load %arg4[%c2_71, %c0_72, %c0_73] : memref<9x8x8xbf16, #tpu.memory_space<vmem>>, vector<1x8x8xbf16>
    %78 = vector.shape_cast %77 : vector<1x8x8xbf16> to vector<8x8xbf16>
    %c0_74 = arith.constant 0 : index
    %c111_75 = arith.constant 111 : index
    %79 = vector.load %arg10[%c0_74, %c111_75] : memref<8x640xbf16, #tpu.memory_space<vmem>>, vector<8x384xbf16>
    %cst_76 = arith.constant dense<0.000000e+00> : vector<8x384xf32>
    %80 = tpu.matmul %78, %79, %cst_76 {dimension_numbers = #tpu.dot_dimension_numbers<[1], [0], [0], [1], [0, 0, 1, 1], [], []>} : vector<8x8xbf16>, vector<8x384xbf16>, vector<8x384xf32> -> vector<8x384xf32>
    %81 = arith.addf %76, %80 : vector<8x384xf32>
    %c3_77 = arith.constant 3 : index
    %c0_78 = arith.constant 0 : index
    %c0_79 = arith.constant 0 : index
    %82 = vector.load %arg4[%c3_77, %c0_78, %c0_79] : memref<9x8x8xbf16, #tpu.memory_space<vmem>>, vector<1x8x8xbf16>
    %83 = vector.shape_cast %82 : vector<1x8x8xbf16> to vector<8x8xbf16>
    %c0_80 = arith.constant 0 : index
    %c127_81 = arith.constant 127 : index
    %84 = vector.load %arg10[%c0_80, %c127_81] : memref<8x640xbf16, #tpu.memory_space<vmem>>, vector<8x384xbf16>
    %cst_82 = arith.constant dense<0.000000e+00> : vector<8x384xf32>
    %85 = tpu.matmul %83, %84, %cst_82 {dimension_numbers = #tpu.dot_dimension_numbers<[1], [0], [0], [1], [0, 0, 1, 1], [], []>} : vector<8x8xbf16>, vector<8x384xbf16>, vector<8x384xf32> -> vector<8x384xf32>
    %86 = arith.addf %81, %85 : vector<8x384xf32>
    %c4_83 = arith.constant 4 : index
    %c0_84 = arith.constant 0 : index
    %c0_85 = arith.constant 0 : index
    %87 = vector.load %arg4[%c4_83, %c0_84, %c0_85] : memref<9x8x8xbf16, #tpu.memory_space<vmem>>, vector<1x8x8xbf16>
    %88 = vector.shape_cast %87 : vector<1x8x8xbf16> to vector<8x8xbf16>
    %c0_86 = arith.constant 0 : index
    %c128_87 = arith.constant 128 : index
    %89 = vector.load %arg10[%c0_86, %c128_87] : memref<8x640xbf16, #tpu.memory_space<vmem>>, vector<8x384xbf16>
    %cst_88 = arith.constant dense<0.000000e+00> : vector<8x384xf32>
    %90 = tpu.matmul %88, %89, %cst_88 {dimension_numbers = #tpu.dot_dimension_numbers<[1], [0], [0], [1], [0, 0, 1, 1], [], []>} : vector<8x8xbf16>, vector<8x384xbf16>, vector<8x384xf32> -> vector<8x384xf32>
    %91 = arith.addf %86, %90 : vector<8x384xf32>
    %c5_89 = arith.constant 5 : index
    %c0_90 = arith.constant 0 : index
    %c0_91 = arith.constant 0 : index
    %92 = vector.load %arg4[%c5_89, %c0_90, %c0_91] : memref<9x8x8xbf16, #tpu.memory_space<vmem>>, vector<1x8x8xbf16>
    %93 = vector.shape_cast %92 : vector<1x8x8xbf16> to vector<8x8xbf16>
    %c0_92 = arith.constant 0 : index
    %c129_93 = arith.constant 129 : index
    %94 = vector.load %arg10[%c0_92, %c129_93] : memref<8x640xbf16, #tpu.memory_space<vmem>>, vector<8x384xbf16>
    %cst_94 = arith.constant dense<0.000000e+00> : vector<8x384xf32>
    %95 = tpu.matmul %93, %94, %cst_94 {dimension_numbers = #tpu.dot_dimension_numbers<[1], [0], [0], [1], [0, 0, 1, 1], [], []>} : vector<8x8xbf16>, vector<8x384xbf16>, vector<8x384xf32> -> vector<8x384xf32>
    %96 = arith.addf %91, %95 : vector<8x384xf32>
    %c6_95 = arith.constant 6 : index
    %c0_96 = arith.constant 0 : index
    %c0_97 = arith.constant 0 : index
    %97 = vector.load %arg4[%c6_95, %c0_96, %c0_97] : memref<9x8x8xbf16, #tpu.memory_space<vmem>>, vector<1x8x8xbf16>
    %98 = vector.shape_cast %97 : vector<1x8x8xbf16> to vector<8x8xbf16>
    %c0_98 = arith.constant 0 : index
    %c145_99 = arith.constant 145 : index
    %99 = vector.load %arg10[%c0_98, %c145_99] : memref<8x640xbf16, #tpu.memory_space<vmem>>, vector<8x384xbf16>
    %cst_100 = arith.constant dense<0.000000e+00> : vector<8x384xf32>
    %100 = tpu.matmul %98, %99, %cst_100 {dimension_numbers = #tpu.dot_dimension_numbers<[1], [0], [0], [1], [0, 0, 1, 1], [], []>} : vector<8x8xbf16>, vector<8x384xbf16>, vector<8x384xf32> -> vector<8x384xf32>
    %101 = arith.addf %96, %100 : vector<8x384xf32>
    %c7_101 = arith.constant 7 : index
    %c0_102 = arith.constant 0 : index
    %c0_103 = arith.constant 0 : index
    %102 = vector.load %arg4[%c7_101, %c0_102, %c0_103] : memref<9x8x8xbf16, #tpu.memory_space<vmem>>, vector<1x8x8xbf16>
    %103 = vector.shape_cast %102 : vector<1x8x8xbf16> to vector<8x8xbf16>
    %c0_104 = arith.constant 0 : index
    %c146_105 = arith.constant 146 : index
    %104 = vector.load %arg10[%c0_104, %c146_105] : memref<8x640xbf16, #tpu.memory_space<vmem>>, vector<8x384xbf16>
    %cst_106 = arith.constant dense<0.000000e+00> : vector<8x384xf32>
    %105 = tpu.matmul %103, %104, %cst_106 {dimension_numbers = #tpu.dot_dimension_numbers<[1], [0], [0], [1], [0, 0, 1, 1], [], []>} : vector<8x8xbf16>, vector<8x384xbf16>, vector<8x384xf32> -> vector<8x384xf32>
    %106 = arith.addf %101, %105 : vector<8x384xf32>
    %c8_107 = arith.constant 8 : index
    %c0_108 = arith.constant 0 : index
    %c0_109 = arith.constant 0 : index
    %107 = vector.load %arg4[%c8_107, %c0_108, %c0_109] : memref<9x8x8xbf16, #tpu.memory_space<vmem>>, vector<1x8x8xbf16>
    %108 = vector.shape_cast %107 : vector<1x8x8xbf16> to vector<8x8xbf16>
    %c0_110 = arith.constant 0 : index
    %c147_111 = arith.constant 147 : index
    %109 = vector.load %arg10[%c0_110, %c147_111] : memref<8x640xbf16, #tpu.memory_space<vmem>>, vector<8x384xbf16>
    %cst_112 = arith.constant dense<0.000000e+00> : vector<8x384xf32>
    %110 = tpu.matmul %108, %109, %cst_112 {dimension_numbers = #tpu.dot_dimension_numbers<[1], [0], [0], [1], [0, 0, 1, 1], [], []>} : vector<8x8xbf16>, vector<8x384xbf16>, vector<8x384xf32> -> vector<8x384xf32>
    %111 = arith.addf %106, %110 : vector<8x384xf32>
    %c0_113 = arith.constant 0 : index
    %c0_114 = arith.constant 0 : index
    %112 = vector.load %arg5[%c0_113, %c0_114] : memref<8x1xf32, #tpu.memory_space<vmem>>, vector<8x1xf32>
    %113 = vector.broadcast %112 : vector<8x1xf32> to vector<8x384xf32>
    %114 = arith.addf %111, %113 : vector<8x384xf32>
    %cst_115 = arith.constant 0.000000e+00 : f32
    %115 = vector.broadcast %cst_115 : f32 to vector<8x384xf32>
    %116 = arith.maximumf %114, %115 : vector<8x384xf32>
    %117 = vector.broadcast %0 : vector<1x384xf32> to vector<8x384xf32>
    %118 = arith.mulf %116, %117 : vector<8x384xf32>
    %119 = arith.truncf %118 : vector<8x384xf32> to vector<8x384xbf16>
    %c0_116 = arith.constant 0 : index
    %c128_117 = arith.constant 128 : index
    %120 = vector.load %arg11[%c0_116, %c128_117] : memref<8x640xbf16, #tpu.memory_space<vmem>>, vector<8x384xbf16>
    tpu.vector_store %arg11[%c0_116, %c128_117], %119 {strides = array<i32>} : memref<8x640xbf16, #tpu.memory_space<vmem>>, vector<8x384xbf16>,
    %c0_118 = arith.constant 0 : index
    %c0_119 = arith.constant 0 : index
    %c0_120 = arith.constant 0 : index
    %121 = vector.load %arg6[%c0_118, %c0_119, %c0_120] : memref<9x8x8xbf16, #tpu.memory_space<vmem>>, vector<1x8x8xbf16>
    %122 = vector.shape_cast %121 : vector<1x8x8xbf16> to vector<8x8xbf16>
    %c0_121 = arith.constant 0 : index
    %c109_122 = arith.constant 109 : index
    %123 = vector.load %arg11[%c0_121, %c109_122] : memref<8x640xbf16, #tpu.memory_space<vmem>>, vector<8x384xbf16>
    %cst_123 = arith.constant dense<0.000000e+00> : vector<8x384xf32>
    %124 = tpu.matmul %122, %123, %cst_123 {dimension_numbers = #tpu.dot_dimension_numbers<[1], [0], [0], [1], [0, 0, 1, 1], [], []>} : vector<8x8xbf16>, vector<8x384xbf16>, vector<8x384xf32> -> vector<8x384xf32>
    %c1_124 = arith.constant 1 : index
    %c0_125 = arith.constant 0 : index
    %c0_126 = arith.constant 0 : index
    %125 = vector.load %arg6[%c1_124, %c0_125, %c0_126] : memref<9x8x8xbf16, #tpu.memory_space<vmem>>, vector<1x8x8xbf16>
    %126 = vector.shape_cast %125 : vector<1x8x8xbf16> to vector<8x8xbf16>
    %c0_127 = arith.constant 0 : index
    %c110_128 = arith.constant 110 : index
    %127 = vector.load %arg11[%c0_127, %c110_128] : memref<8x640xbf16, #tpu.memory_space<vmem>>, vector<8x384xbf16>
    %cst_129 = arith.constant dense<0.000000e+00> : vector<8x384xf32>
    %128 = tpu.matmul %126, %127, %cst_129 {dimension_numbers = #tpu.dot_dimension_numbers<[1], [0], [0], [1], [0, 0, 1, 1], [], []>} : vector<8x8xbf16>, vector<8x384xbf16>, vector<8x384xf32> -> vector<8x384xf32>
    %129 = arith.addf %124, %128 : vector<8x384xf32>
    %c2_130 = arith.constant 2 : index
    %c0_131 = arith.constant 0 : index
    %c0_132 = arith.constant 0 : index
    %130 = vector.load %arg6[%c2_130, %c0_131, %c0_132] : memref<9x8x8xbf16, #tpu.memory_space<vmem>>, vector<1x8x8xbf16>
    %131 = vector.shape_cast %130 : vector<1x8x8xbf16> to vector<8x8xbf16>
    %c0_133 = arith.constant 0 : index
    %c111_134 = arith.constant 111 : index
    %132 = vector.load %arg11[%c0_133, %c111_134] : memref<8x640xbf16, #tpu.memory_space<vmem>>, vector<8x384xbf16>
    %cst_135 = arith.constant dense<0.000000e+00> : vector<8x384xf32>
    %133 = tpu.matmul %131, %132, %cst_135 {dimension_numbers = #tpu.dot_dimension_numbers<[1], [0], [0], [1], [0, 0, 1, 1], [], []>} : vector<8x8xbf16>, vector<8x384xbf16>, vector<8x384xf32> -> vector<8x384xf32>
    %134 = arith.addf %129, %133 : vector<8x384xf32>
    %c3_136 = arith.constant 3 : index
    %c0_137 = arith.constant 0 : index
    %c0_138 = arith.constant 0 : index
    %135 = vector.load %arg6[%c3_136, %c0_137, %c0_138] : memref<9x8x8xbf16, #tpu.memory_space<vmem>>, vector<1x8x8xbf16>
    %136 = vector.shape_cast %135 : vector<1x8x8xbf16> to vector<8x8xbf16>
    %c0_139 = arith.constant 0 : index
    %c127_140 = arith.constant 127 : index
    %137 = vector.load %arg11[%c0_139, %c127_140] : memref<8x640xbf16, #tpu.memory_space<vmem>>, vector<8x384xbf16>
    %cst_141 = arith.constant dense<0.000000e+00> : vector<8x384xf32>
    %138 = tpu.matmul %136, %137, %cst_141 {dimension_numbers = #tpu.dot_dimension_numbers<[1], [0], [0], [1], [0, 0, 1, 1], [], []>} : vector<8x8xbf16>, vector<8x384xbf16>, vector<8x384xf32> -> vector<8x384xf32>
    %139 = arith.addf %134, %138 : vector<8x384xf32>
    %c4_142 = arith.constant 4 : index
    %c0_143 = arith.constant 0 : index
    %c0_144 = arith.constant 0 : index
    %140 = vector.load %arg6[%c4_142, %c0_143, %c0_144] : memref<9x8x8xbf16, #tpu.memory_space<vmem>>, vector<1x8x8xbf16>
    %141 = vector.shape_cast %140 : vector<1x8x8xbf16> to vector<8x8xbf16>
    %c0_145 = arith.constant 0 : index
    %c128_146 = arith.constant 128 : index
    %142 = vector.load %arg11[%c0_145, %c128_146] : memref<8x640xbf16, #tpu.memory_space<vmem>>, vector<8x384xbf16>
    %cst_147 = arith.constant dense<0.000000e+00> : vector<8x384xf32>
    %143 = tpu.matmul %141, %142, %cst_147 {dimension_numbers = #tpu.dot_dimension_numbers<[1], [0], [0], [1], [0, 0, 1, 1], [], []>} : vector<8x8xbf16>, vector<8x384xbf16>, vector<8x384xf32> -> vector<8x384xf32>
    %144 = arith.addf %139, %143 : vector<8x384xf32>
    %c5_148 = arith.constant 5 : index
    %c0_149 = arith.constant 0 : index
    %c0_150 = arith.constant 0 : index
    %145 = vector.load %arg6[%c5_148, %c0_149, %c0_150] : memref<9x8x8xbf16, #tpu.memory_space<vmem>>, vector<1x8x8xbf16>
    %146 = vector.shape_cast %145 : vector<1x8x8xbf16> to vector<8x8xbf16>
    %c0_151 = arith.constant 0 : index
    %c129_152 = arith.constant 129 : index
    %147 = vector.load %arg11[%c0_151, %c129_152] : memref<8x640xbf16, #tpu.memory_space<vmem>>, vector<8x384xbf16>
    %cst_153 = arith.constant dense<0.000000e+00> : vector<8x384xf32>
    %148 = tpu.matmul %146, %147, %cst_153 {dimension_numbers = #tpu.dot_dimension_numbers<[1], [0], [0], [1], [0, 0, 1, 1], [], []>} : vector<8x8xbf16>, vector<8x384xbf16>, vector<8x384xf32> -> vector<8x384xf32>
    %149 = arith.addf %144, %148 : vector<8x384xf32>
    %c6_154 = arith.constant 6 : index
    %c0_155 = arith.constant 0 : index
    %c0_156 = arith.constant 0 : index
    %150 = vector.load %arg6[%c6_154, %c0_155, %c0_156] : memref<9x8x8xbf16, #tpu.memory_space<vmem>>, vector<1x8x8xbf16>
    %151 = vector.shape_cast %150 : vector<1x8x8xbf16> to vector<8x8xbf16>
    %c0_157 = arith.constant 0 : index
    %c145_158 = arith.constant 145 : index
    %152 = vector.load %arg11[%c0_157, %c145_158] : memref<8x640xbf16, #tpu.memory_space<vmem>>, vector<8x384xbf16>
    %cst_159 = arith.constant dense<0.000000e+00> : vector<8x384xf32>
    %153 = tpu.matmul %151, %152, %cst_159 {dimension_numbers = #tpu.dot_dimension_numbers<[1], [0], [0], [1], [0, 0, 1, 1], [], []>} : vector<8x8xbf16>, vector<8x384xbf16>, vector<8x384xf32> -> vector<8x384xf32>
    %154 = arith.addf %149, %153 : vector<8x384xf32>
    %c7_160 = arith.constant 7 : index
    %c0_161 = arith.constant 0 : index
    %c0_162 = arith.constant 0 : index
    %155 = vector.load %arg6[%c7_160, %c0_161, %c0_162] : memref<9x8x8xbf16, #tpu.memory_space<vmem>>, vector<1x8x8xbf16>
    %156 = vector.shape_cast %155 : vector<1x8x8xbf16> to vector<8x8xbf16>
    %c0_163 = arith.constant 0 : index
    %c146_164 = arith.constant 146 : index
    %157 = vector.load %arg11[%c0_163, %c146_164] : memref<8x640xbf16, #tpu.memory_space<vmem>>, vector<8x384xbf16>
    %cst_165 = arith.constant dense<0.000000e+00> : vector<8x384xf32>
    %158 = tpu.matmul %156, %157, %cst_165 {dimension_numbers = #tpu.dot_dimension_numbers<[1], [0], [0], [1], [0, 0, 1, 1], [], []>} : vector<8x8xbf16>, vector<8x384xbf16>, vector<8x384xf32> -> vector<8x384xf32>
    %159 = arith.addf %154, %158 : vector<8x384xf32>
    %c8_166 = arith.constant 8 : index
    %c0_167 = arith.constant 0 : index
    %c0_168 = arith.constant 0 : index
    %160 = vector.load %arg6[%c8_166, %c0_167, %c0_168] : memref<9x8x8xbf16, #tpu.memory_space<vmem>>, vector<1x8x8xbf16>
    %161 = vector.shape_cast %160 : vector<1x8x8xbf16> to vector<8x8xbf16>
    %c0_169 = arith.constant 0 : index
    %c147_170 = arith.constant 147 : index
    %162 = vector.load %arg11[%c0_169, %c147_170] : memref<8x640xbf16, #tpu.memory_space<vmem>>, vector<8x384xbf16>
    %cst_171 = arith.constant dense<0.000000e+00> : vector<8x384xf32>
    %163 = tpu.matmul %161, %162, %cst_171 {dimension_numbers = #tpu.dot_dimension_numbers<[1], [0], [0], [1], [0, 0, 1, 1], [], []>} : vector<8x8xbf16>, vector<8x384xbf16>, vector<8x384xf32> -> vector<8x384xf32>
    %164 = arith.addf %159, %163 : vector<8x384xf32>
    %c0_172 = arith.constant 0 : index
    %c0_173 = arith.constant 0 : index
    %165 = vector.load %arg7[%c0_172, %c0_173] : memref<8x1xf32, #tpu.memory_space<vmem>>, vector<8x1xf32>
    %166 = vector.broadcast %165 : vector<8x1xf32> to vector<8x384xf32>
    %167 = arith.addf %164, %166 : vector<8x384xf32>
    %c0_174 = arith.constant 0 : index
    %c128_175 = arith.constant 128 : index
    %168 = vector.load %arg10[%c0_174, %c128_175] : memref<8x640xbf16, #tpu.memory_space<vmem>>, vector<8x384xbf16>
    %169 = arith.extf %168 : vector<8x384xbf16> to vector<8x384xf32>
    %170 = arith.addf %169, %167 : vector<8x384xf32>
    %cst_176 = arith.constant 0.000000e+00 : f32
    %171 = vector.broadcast %cst_176 : f32 to vector<8x384xf32>
    %172 = arith.maximumf %170, %171 : vector<8x384xf32>
    %c0_177 = arith.constant 0 : index
    %c0_178 = arith.constant 0 : index
    %c0_179 = arith.constant 0 : index
    %173 = vector.load %arg9[%c0_177, %c0_178, %c0_179] : memref<1x8x384xf32, #tpu.memory_space<vmem>>, vector<1x8x384xf32>
    %174 = vector.shape_cast %173 : vector<1x8x384xf32> to vector<8x384xf32>
    %175 = vector.shape_cast %172 : vector<8x384xf32> to vector<1x8x384xf32>
    tpu.vector_store %arg9[%c0_177, %c0_178, %c0_179], %175 {strides = array<i32>} : memref<1x8x384xf32, #tpu.memory_space<vmem>>, vector<1x8x384xf32>,
    return
  }
  func.func @transform_0(%arg0: i32) -> (i32, i32, i32) {
    %c0_i32 = arith.constant 0 : i32
    %c0_i32_0 = arith.constant 0 : i32
    %c0_i32_1 = arith.constant 0 : i32
    return %arg0, %c0_i32, %c0_i32_0 : i32, i32, i32
  }
  func.func @transform_1(%arg0: i32) -> (i32, i32, i32) {
    %c0_i32 = arith.constant 0 : i32
    %c0_i32_0 = arith.constant 0 : i32
    %c0_i32_1 = arith.constant 0 : i32
    %c0_i32_2 = arith.constant 0 : i32
    return %c0_i32, %c0_i32_0, %c0_i32_1 : i32, i32, i32
  }
  func.func @transform_2(%arg0: i32) -> (i32, i32) {
    %c0_i32 = arith.constant 0 : i32
    %c0_i32_0 = arith.constant 0 : i32
    %c0_i32_1 = arith.constant 0 : i32
    return %c0_i32, %c0_i32_0 : i32, i32
  }
  func.func @transform_3(%arg0: i32) -> (i32, i32, i32) {
    %c0_i32 = arith.constant 0 : i32
    %c0_i32_0 = arith.constant 0 : i32
    %c0_i32_1 = arith.constant 0 : i32
    %c0_i32_2 = arith.constant 0 : i32
    return %c0_i32, %c0_i32_0, %c0_i32_1 : i32, i32, i32
  }
  func.func @transform_4(%arg0: i32) -> (i32, i32) {
    %c0_i32 = arith.constant 0 : i32
    %c0_i32_0 = arith.constant 0 : i32
    %c0_i32_1 = arith.constant 0 : i32
    return %c0_i32, %c0_i32_0 : i32, i32
  }
  func.func @transform_5(%arg0: i32) -> (i32, i32, i32) {
    %c0_i32 = arith.constant 0 : i32
    %c0_i32_0 = arith.constant 0 : i32
    %c0_i32_1 = arith.constant 0 : i32
    %c0_i32_2 = arith.constant 0 : i32
    return %c0_i32, %c0_i32_0, %c0_i32_1 : i32, i32, i32
  }
  func.func @transform_6(%arg0: i32) -> (i32, i32) {
    %c0_i32 = arith.constant 0 : i32
    %c0_i32_0 = arith.constant 0 : i32
    %c0_i32_1 = arith.constant 0 : i32
    return %c0_i32, %c0_i32_0 : i32, i32
  }
  func.func @transform_7(%arg0: i32) -> (i32, i32) {
    %c0_i32 = arith.constant 0 : i32
    %c0_i32_0 = arith.constant 0 : i32
    %c0_i32_1 = arith.constant 0 : i32
    return %c0_i32, %c0_i32_0 : i32, i32
  }
  func.func @transform_8(%arg0: i32) -> (i32, i32, i32) {
    %c0_i32 = arith.constant 0 : i32
    %c0_i32_0 = arith.constant 0 : i32
    %c0_i32_1 = arith.constant 0 : i32
    return %arg0, %c0_i32, %c0_i32_0 : i32, i32, i32
  }
}

</mosaic_0001>

<llo_original>
// kernel: tpu_custom_call.1
$region0: #{tpu_custom_call.1}
  #allocation0 [shape = 'u32[]', space=smem, size = 0x4, offset = 0x4, fixed_abs, tag = 'smem constant byte address 0x4 - core index']
  #allocation1 [shape = 'u32[72,128]{1,0:T(1,128)}', space=vmem, size = 0x9000, scoped, tag = 'internal scratch']
  #allocation2 [shape = 'bf16[8,640]{1,0:T(8,128)(2,1)}', space=vmem, size = 0x2800, scoped, tag = 'scratch operand']
  #allocation3 [shape = 'bf16[8,640]{1,0:T(8,128)(2,1)}', space=vmem, size = 0x2800, scoped, tag = 'scratch operand']
  %s0 = inlined_call_operand.vmem [shape: bf16[2,4,640], index: 0, kind: input, shape index: {}]
  %s1 = inlined_call_operand.vmem [shape: bf16[9,8,4], index: 1, kind: input, shape index: {}]
  %s2 = inlined_call_operand.vmem [shape: f32[8,1], index: 2, kind: input, shape index: {}]
  %s3 = inlined_call_operand.vmem [shape: bf16[9,8,8], index: 3, kind: input, shape index: {}]
  %s4 = inlined_call_operand.vmem [shape: f32[8,1], index: 4, kind: input, shape index: {}]
  %s5 = inlined_call_operand.vmem [shape: bf16[9,8,8], index: 5, kind: input, shape index: {}]
  %s6 = inlined_call_operand.vmem [shape: f32[8,1], index: 6, kind: input, shape index: {}]
  %s7 = inlined_call_operand.vmem [shape: f32[1,384], index: 7, kind: input, shape index: {}]
  %s8 = inlined_call_operand.hbm [shape: f32[2,8,384], index: 8, kind: output, shape index: {}]
  %s9 = sld [smem:[#allocation0]]
  $region65: #{tpu_custom_call.1} parent=0
    _
  %s11 = ssub.s32 1, %s9
  %s12 = scalar_select 0, %s11, %s9
  $region1: #{tpu_custom_call.1} parent=0
    #allocation4 [shape = 'u8[24576]{0}', space=vmem, size = 0x6000, scoped, tag = 'output window, operand 0']
    #allocation5 [shape = 's32[2]{0}', space=sflag, size = 0x8, scoped, tag = 'scoped memory for tpu_custom_call.1']
    %13 = vsyncpa [#allocation5], 0
    %s14 = scalar_lea.sflag [#allocation5], 1
    %15 = vsyncpa %s14, 0
    loop: start=0, step=1, limit=4
    $region2: #{tpu_custom_call.1} parent=1 // loop_pre_header
      _
    $region3: #{tpu_custom_call.1} parent=1 // loop_header
      %s17 = sphi 0, %s21
      %p18 = scmp.ge.s32.totalorder %s17, 4
      %s27 = sphi 0, %s29
      %s30 = sphi 0, %s27
      %s31 = sphi 0, %s30
      %s47 = sphi 0, %s31
      %s51 = sphi 0, %s51
      %s53 = sphi 0, %s51
      %s54 = sphi 0, %s53
      %s68 = sphi 0, %s54
      %s72 = sphi 0, %s72
      %s74 = sphi 0, %s72
      %s75 = sphi 0, %s74
      %s89 = sphi 0, %s75
      %s93 = sphi 0, %s93
      %s95 = sphi 0, %s93
      %s96 = sphi 0, %s95
      %s110 = sphi 0, %s96
      %s114 = sphi 0, %s114
      %s116 = sphi 0, %s114
      %s117 = sphi 0, %s116
      %s131 = sphi 0, %s117
      %s135 = sphi 0, %s135
      %s137 = sphi 0, %s135
      %s138 = sphi 0, %s137
      %s152 = sphi 0, %s138
      %s156 = sphi 0, %s156
      %s158 = sphi 0, %s156
      %s159 = sphi 0, %s158
      %s173 = sphi 0, %s159
      %s177 = sphi 0, %s177
      %s179 = sphi 0, %s177
      %s180 = sphi 0, %s179
      %s194 = sphi 0, %s180
      %s200 = sphi 0, %s202
      %s203 = sphi 0, %s200
      %s204 = sphi 0, %s203
      %s220 = sphi 0, %s204
    $region4: #{tpu_custom_call.1} parent=1 // loop_header_branch
      %20 = sbr.rel (%p18) target = $region8
    $region5: #{tpu_custom_call.1} parent=1 // loop_body
      %s22 = ssub.s32 %s17, 1
      %s23 = ssub.s32 %s17, 2
      %s24 = sadd.s32 %s17, 1
      %s25 = ssub.s32 %s17, %s24
      %p26 = scmp.eq.s32.totalorder %s25, 0
      %s28 = sadd.s32 %s27, 1
      %s29 = scalar_select %p26, %s27, %s28
      %p32 = pneg %p26
      %p33 = scmp.eq.s32.totalorder %s17, 1
      %p34 = por %p32, %p33
      %p35 = scmp.ne.s32.totalorder %s27, %s30
      %p36 = scmp.eq.s32.totalorder %s17, 0
      %p37 = por %p35, %p36
      %p38 = scmp.ne.s32.totalorder %s27, %s30
      %p39 = scmp.eq.s32.totalorder %s22, 1
      %p40 = por %p38, %p39
      %p41 = scmp.ne.s32.totalorder %s30, %s31
      %p42 = scmp.eq.s32.totalorder %s22, 0
      %p43 = por %p41, %p42
      %p44 = scmp.ne.s32.totalorder %s30, %s31
      %p45 = scmp.eq.s32.totalorder %s23, 1
      %p46 = por %p44, %p45
      %p48 = scmp.ne.s32.totalorder %s31, %s47
      %p49 = scmp.eq.s32.totalorder %s23, 0
      %p50 = por %p48, %p49
      %s52 = sadd.s32 %s51, 1
      %p55 = scmp.eq.s32.totalorder %s17, 1
      %p56 = scmp.ne.s32.totalorder %s51, %s53
      %p57 = scmp.eq.s32.totalorder %s17, 0
      %p58 = por %p56, %p57
      %p59 = scmp.ne.s32.totalorder %s51, %s53
      %p60 = scmp.eq.s32.totalorder %s22, 1
      %p61 = por %p59, %p60
      %p62 = scmp.ne.s32.totalorder %s53, %s54
      %p63 = scmp.eq.s32.totalorder %s22, 0
      %p64 = por %p62, %p63
      %p65 = scmp.ne.s32.totalorder %s53, %s54
      %p66 = scmp.eq.s32.totalorder %s23, 1
      %p67 = por %p65, %p66
      %p69 = scmp.ne.s32.totalorder %s54, %s68
      %p70 = scmp.eq.s32.totalorder %s23, 0
      %p71 = por %p69, %p70
      %s73 = sadd.s32 %s72, 1
      %p76 = scmp.eq.s32.totalorder %s17, 1
      %p77 = scmp.ne.s32.totalorder %s72, %s74
      %p78 = scmp.eq.s32.totalorder %s17, 0
      %p79 = por %p77, %p78
      %p80 = scmp.ne.s32.totalorder %s72, %s74
      %p81 = scmp.eq.s32.totalorder %s22, 1
      %p82 = por %p80, %p81
      %p83 = scmp.ne.s32.totalorder %s74, %s75
      %p84 = scmp.eq.s32.totalorder %s22, 0
      %p85 = por %p83, %p84
      %p86 = scmp.ne.s32.totalorder %s74, %s75
      %p87 = scmp.eq.s32.totalorder %s23, 1
      %p88 = por %p86, %p87
      %p90 = scmp.ne.s32.totalorder %s75, %s89
      %p91 = scmp.eq.s32.totalorder %s23, 0
      %p92 = por %p90, %p91
      %s94 = sadd.s32 %s93, 1
      %p97 = scmp.eq.s32.totalorder %s17, 1
      %p98 = scmp.ne.s32.totalorder %s93, %s95
      %p99 = scmp.eq.s32.totalorder %s17, 0
      %p100 = por %p98, %p99
      %p101 = scmp.ne.s32.totalorder %s93, %s95
      %p102 = scmp.eq.s32.totalorder %s22, 1
      %p103 = por %p101, %p102
      %p104 = scmp.ne.s32.totalorder %s95, %s96
      %p105 = scmp.eq.s32.totalorder %s22, 0
      %p106 = por %p104, %p105
      %p107 = scmp.ne.s32.totalorder %s95, %s96
      %p108 = scmp.eq.s32.totalorder %s23, 1
      %p109 = por %p107, %p108
      %p111 = scmp.ne.s32.totalorder %s96, %s110
      %p112 = scmp.eq.s32.totalorder %s23, 0
      %p113 = por %p111, %p112
      %s115 = sadd.s32 %s114, 1
      %p118 = scmp.eq.s32.totalorder %s17, 1
      %p119 = scmp.ne.s32.totalorder %s114, %s116
      %p120 = scmp.eq.s32.totalorder %s17, 0
      %p121 = por %p119, %p120
      %p122 = scmp.ne.s32.totalorder %s114, %s116
      %p123 = scmp.eq.s32.totalorder %s22, 1
      %p124 = por %p122, %p123
      %p125 = scmp.ne.s32.totalorder %s116, %s117
      %p126 = scmp.eq.s32.totalorder %s22, 0
      %p127 = por %p125, %p126
      %p128 = scmp.ne.s32.totalorder %s116, %s117
      %p129 = scmp.eq.s32.totalorder %s23, 1
      %p130 = por %p128, %p129
      %p132 = scmp.ne.s32.totalorder %s117, %s131
      %p133 = scmp.eq.s32.totalorder %s23, 0
      %p134 = por %p132, %p133
      %s136 = sadd.s32 %s135, 1
      %p139 = scmp.eq.s32.totalorder %s17, 1
      %p140 = scmp.ne.s32.totalorder %s135, %s137
      %p141 = scmp.eq.s32.totalorder %s17, 0
      %p142 = por %p140, %p141
      %p143 = scmp.ne.s32.totalorder %s135, %s137
      %p144 = scmp.eq.s32.totalorder %s22, 1
      %p145 = por %p143, %p144
      %p146 = scmp.ne.s32.totalorder %s137, %s138
      %p147 = scmp.eq.s32.totalorder %s22, 0
      %p148 = por %p146, %p147
      %p149 = scmp.ne.s32.totalorder %s137, %s138
      %p150 = scmp.eq.s32.totalorder %s23, 1
      %p151 = por %p149, %p150
      %p153 = scmp.ne.s32.totalorder %s138, %s152
      %p154 = scmp.eq.s32.totalorder %s23, 0
      %p155 = por %p153, %p154
      %s157 = sadd.s32 %s156, 1
      %p160 = scmp.eq.s32.totalorder %s17, 1
      %p161 = scmp.ne.s32.totalorder %s156, %s158
      %p162 = scmp.eq.s32.totalorder %s17, 0
      %p163 = por %p161, %p162
      %p164 = scmp.ne.s32.totalorder %s156, %s158
      %p165 = scmp.eq.s32.totalorder %s22, 1
      %p166 = por %p164, %p165
      %p167 = scmp.ne.s32.totalorder %s158, %s159
      %p168 = scmp.eq.s32.totalorder %s22, 0
      %p169 = por %p167, %p168
      %p170 = scmp.ne.s32.totalorder %s158, %s159
      %p171 = scmp.eq.s32.totalorder %s23, 1
      %p172 = por %p170, %p171
      %p174 = scmp.ne.s32.totalorder %s159, %s173
      %p175 = scmp.eq.s32.totalorder %s23, 0
      %p176 = por %p174, %p175
      %s178 = sadd.s32 %s177, 1
      %p181 = scmp.eq.s32.totalorder %s17, 1
      %p182 = scmp.ne.s32.totalorder %s177, %s179
      %p183 = scmp.eq.s32.totalorder %s17, 0
      %p184 = por %p182, %p183
      %p185 = scmp.ne.s32.totalorder %s177, %s179
      %p186 = scmp.eq.s32.totalorder %s22, 1
      %p187 = por %p185, %p186
      %p188 = scmp.ne.s32.totalorder %s179, %s180
      %p189 = scmp.eq.s32.totalorder %s22, 0
      %p190 = por %p188, %p189
      %p191 = scmp.ne.s32.totalorder %s179, %s180
      %p192 = scmp.eq.s32.totalorder %s23, 1
      %p193 = por %p191, %p192
      %p195 = scmp.ne.s32.totalorder %s180, %s194
      %p196 = scmp.eq.s32.totalorder %s23, 0
      %p197 = por %p195, %p196
      %s198 = ssub.s32 %s17, %s24
      %p199 = scmp.eq.s32.totalorder %s198, 0
      %s201 = sadd.s32 %s200, 1
      %s202 = scalar_select %p199, %s200, %s201
      %p205 = pneg %p199
      %p206 = scmp.eq.s32.totalorder %s17, 1
      %p207 = por %p205, %p206
      %p208 = scmp.ne.s32.totalorder %s200, %s203
      %p209 = scmp.eq.s32.totalorder %s17, 0
      %p210 = por %p208, %p209
      %p211 = scmp.ne.s32.totalorder %s200, %s203
      %p212 = scmp.eq.s32.totalorder %s22, 1
      %p213 = por %p211, %p212
      %p214 = scmp.ne.s32.totalorder %s203, %s204
      %p215 = scmp.eq.s32.totalorder %s22, 0
      %p216 = por %p214, %p215
      %p217 = scmp.ne.s32.totalorder %s203, %s204
      %p218 = scmp.eq.s32.totalorder %s23, 1
      %p219 = por %p217, %p218
      %p221 = scmp.ne.s32.totalorder %s204, %s220
      %p222 = scmp.eq.s32.totalorder %s23, 0
      %p223 = por %p221, %p222
      %p224 = scmp.le.s32.totalorder 1, %s17
      %p225 = scmp.lt.s32.totalorder %s17, 3
      %p226 = pnand %p224, %p225
      %p227 = pneg %p226
      // Predicated region
      $region9: #{tpu_custom_call.1} parent=5 // pred_check
        _
      $region10: #{tpu_custom_call.1} parent=5 // pred_check_branch
        %229 = sbr.rel (%p226) target = $region12
      $region11: #{tpu_custom_call.1} parent=5 // pred_region
        %s230 = ssub.s32 %s17, 1
        // Predicated region
        $region13: #{tpu_custom_call.1} parent=11 // pred_check
          %p231 = pneg %p64
        $region14: #{tpu_custom_call.1} parent=11 // pred_check_branch
          %233 = sbr.rel (%p231) target = $region16
        $region15: #{tpu_custom_call.1} parent=11 // pred_region
          _
        $region16: #{tpu_custom_call.1} parent=11 // pred_fallthru
          _
        // Predicated region
        $region17: #{tpu_custom_call.1} parent=11 // pred_check
          %p234 = pneg %p85
        $region18: #{tpu_custom_call.1} parent=11 // pred_check_branch
          %236 = sbr.rel (%p234) target = $region20
        $region19: #{tpu_custom_call.1} parent=11 // pred_region
          _
        $region20: #{tpu_custom_call.1} parent=11 // pred_fallthru
          _
        // Predicated region
        $region21: #{tpu_custom_call.1} parent=11 // pred_check
          %p237 = pneg %p106
        $region22: #{tpu_custom_call.1} parent=11 // pred_check_branch
          %239 = sbr.rel (%p237) target = $region24
        $region23: #{tpu_custom_call.1} parent=11 // pred_region
          _
        $region24: #{tpu_custom_call.1} parent=11 // pred_fallthru
          _
        // Predicated region
        $region25: #{tpu_custom_call.1} parent=11 // pred_check
          %p240 = pneg %p127
        $region26: #{tpu_custom_call.1} parent=11 // pred_check_branch
          %242 = sbr.rel (%p240) target = $region28
        $region27: #{tpu_custom_call.1} parent=11 // pred_region
          _
        $region28: #{tpu_custom_call.1} parent=11 // pred_fallthru
          _
        // Predicated region
        $region29: #{tpu_custom_call.1} parent=11 // pred_check
          %p243 = pneg %p148
        $region30: #{tpu_custom_call.1} parent=11 // pred_check_branch
          %245 = sbr.rel (%p243) target = $region32
        $region31: #{tpu_custom_call.1} parent=11 // pred_region
          _
        $region32: #{tpu_custom_call.1} parent=11 // pred_fallthru
          _
        // Predicated region
        $region33: #{tpu_custom_call.1} parent=11 // pred_check
          %p246 = pneg %p169
        $region34: #{tpu_custom_call.1} parent=11 // pred_check_branch
          %248 = sbr.rel (%p246) target = $region36
        $region35: #{tpu_custom_call.1} parent=11 // pred_region
          _
        $region36: #{tpu_custom_call.1} parent=11 // pred_fallthru
          _
        // Predicated region
        $region37: #{tpu_custom_call.1} parent=11 // pred_check
          %p249 = pneg %p190
        $region38: #{tpu_custom_call.1} parent=11 // pred_check_branch
          %251 = sbr.rel (%p249) target = $region40
        $region39: #{tpu_custom_call.1} parent=11 // pred_region
          _
        $region40: #{tpu_custom_call.1} parent=11 // pred_fallthru
          _
      $region12: #{tpu_custom_call.1} parent=5 // pred_fallthru
        _
      %p252 = scmp.lt.s32.totalorder %s17, 2
      // Predicated region
      $region41: #{tpu_custom_call.1} parent=5 // pred_check
        %p253 = pneg %p252
      $region42: #{tpu_custom_call.1} parent=5 // pred_check_branch
        %255 = sbr.rel (%p253) target = $region44
      $region43: #{tpu_custom_call.1} parent=5 // pred_region
        // Predicated region
        $region45: #{tpu_custom_call.1} parent=43 // pred_check
          %p256 = pneg %p37
        $region46: #{tpu_custom_call.1} parent=43 // pred_check_branch
          %258 = sbr.rel (%p256) target = $region48
        $region47: #{tpu_custom_call.1} parent=43 // pred_region
          %p259 = scmp.lt.s32.totalorder %s17, 1
          %s260 = scalar_select %p259, %s17, 1
          %s261 = smul.addr %s260, 5
          %s262 = smul.addr %s261, 2
          %s263 = scalar_lea.vmem %s0, %s262
        $region48: #{tpu_custom_call.1} parent=43 // pred_fallthru
          _
      $region44: #{tpu_custom_call.1} parent=5 // pred_fallthru
        _
      %p264 = scmp.le.s32.totalorder 1, %s17
      %p265 = scmp.lt.s32.totalorder %s17, 3
      %p266 = pnand %p264, %p265
      %p267 = pneg %p266
      // Predicated region
      $region49: #{tpu_custom_call.1} parent=5 // pred_check
        _
      $region50: #{tpu_custom_call.1} parent=5 // pred_check_branch
        %269 = sbr.rel (%p266) target = $region52
      $region51: #{tpu_custom_call.1} parent=5 // pred_region
        %s270 = ssub.s32 %s17, 1
        %p271 = scmp.lt.s32.totalorder %s22, 1
        %s272 = scalar_select %p271, %s22, 1
        %s273 = smul.addr %s272, 5
        %s274 = smul.addr %s273, 2
        %s275 = scalar_lea.vmem %s0, %s274
        %p276 = pneg %p43
        %p277 = pneg %p40
        %p278 = pneg %p64
        %p279 = pneg %p61
        %p280 = pneg %p85
        %p281 = pneg %p82
        %p282 = pneg %p106
        %p283 = pneg %p103
        %p284 = pneg %p127
        %p285 = pneg %p124
        %p286 = pneg %p148
        %p287 = pneg %p145
        %p288 = pneg %p169
        %p289 = pneg %p166
        %p290 = pneg %p190
        %p291 = pneg %p187
        %p292 = pneg %p216
        %p293 = pneg %p213
        %s294 = sand.u32 %s203, 1
        %s295 = scalar_lea.sflag [#allocation5], %s294
        %s296 = sand.u32 %s203, 1
        %s297 = smul.addr %s296, 24
        %s298 = scalar_lea.vmem [#allocation4], %s297
        %p299 = scmp.lt.s32.totalorder %s22, 1
        %s300 = scalar_select %p299, %s22, 1
        %s301 = smul.addr %s300, 5
        %s302 = smul.addr %s301, 2
        %s303 = scalar_lea.vmem %s0, %s302
        %v305 = vld [vmem:[%s7] sm:$0x7]
        %306 = vst [vmem:[#allocation2] sm:$0xf] 0
        %307 = vst [vmem:[#allocation2 + $0x10] sm:$0xf] 0
        %308 = vst [vmem:[#allocation3] sm:$0xf] 0
        %309 = vst [vmem:[#allocation3 + $0x10] sm:$0xf] 0
        %v310 = vld [vmem:[%s1] sm:$0xf]
        %v311 = vld [vmem:[%s303] sm:$0xff]
        %s312 = scalar_lea.vmem %s1, 4
        %v313 = vld [vmem:[%s312] sm:$0xf]
        %315 = vst [vmem:[#allocation1] ss:$4 sm:$0xff] %v311
        %v316 = vld.sshfl [vmem:[#allocation1] sm:$0xff pattern:$0x73625140]
        %v318 = vld.sshfl [vmem:[#allocation1 + $0x8] sm:$0xff pattern:$0x73625140]
        %v320 = vld.sshfl [vmem:[#allocation1 + $0x10] sm:$0xff pattern:$0x73625140]
        %v322 = vld.sshfl [vmem:[#allocation1 + $0x18] sm:$0xff pattern:$0x73625140]
        %324 = vrot.lane.b32.xlu0 %v316, 18
        %v325 = vpop.permute.xlu0 %324
        %326 = vrot.lane.b32.xlu0 %v318, 18
        %v327 = vpop.permute.xlu0 %326
        %328 = vrot.lane.b32.xlu0 %v320, 18
        %v329 = vpop.permute.xlu0 %328
        %330 = vrot.lane.b32.xlu0 %v322, 18
        %v331 = vpop.permute.xlu0 %330
        %vm332 = vcmask 146432
        %v333 = vsel %vm332, %v325, %v327
        %v334 = vsel %vm332, %v327, %v329
        %v335 = vsel %vm332, %v329, %v331
        %vm336 = vcmask 31744
        %v338 = vsel %vm336, %v313, 0
        %vm340 = vcmask 1041408
        %v342 = vsel %vm340, %v333, 0
        %v345 = vsel %vm340, %v334, 0
        %v348 = vsel %vm340, %v335, 0
        %350 = vmatpush.bf16.msra.mxu0 0
        %351 = vmatpush.bf16.msra.mxu0 0
        %352 = vmatpush.bf16.msra.mxu0 0
        %353 = vmatpush.bf16.msra.mxu0 0
        %354 = vmatpush.bf16.msra.mxu0 0
        %355 = vmatpush.bf16.msra.mxu0 0
        %356 = vmatpush.bf16.msra.mxu0 0
        %357 = vmatpush.bf16.msra.mxu0 %v342
        %358 = vmatmul.bf16.gmra.mxu0 %v338
        %v359 = vpop.f32.mrf.mxu0
        %v360 = vadd.f32 0.0, %v359
        %v361 = vpop.f32.mrf.mxu0
        %362 = vdwg.mxu0
        %363 = vmatpush.bf16.msra.mxu0 0
        %364 = vmatpush.bf16.msra.mxu0 0
        %365 = vmatpush.bf16.msra.mxu0 0
        %366 = vmatpush.bf16.msra.mxu0 0
        %367 = vmatpush.bf16.msra.mxu0 0
        %368 = vmatpush.bf16.msra.mxu0 0
        %369 = vmatpush.bf16.msra.mxu0 0
        %370 = vmatpush.bf16.msra.mxu0 %v345
        %371 = vmatmul.bf16.gmra.mxu0 %v338
        %v372 = vpop.f32.mrf.mxu0
        %v373 = vadd.f32 0.0, %v372
        %v374 = vpop.f32.mrf.mxu0
        %375 = vdwg.mxu0
        %376 = vmatpush.bf16.msra.mxu0 0
        %377 = vmatpush.bf16.msra.mxu0 0
        %378 = vmatpush.bf16.msra.mxu0 0
        %379 = vmatpush.bf16.msra.mxu0 0
        %380 = vmatpush.bf16.msra.mxu0 0
        %381 = vmatpush.bf16.msra.mxu0 0
        %382 = vmatpush.bf16.msra.mxu0 0
        %383 = vmatpush.bf16.msra.mxu0 %v348
        %384 = vmatmul.bf16.gmra.mxu0 %v338
        %v385 = vpop.f32.mrf.mxu0
        %v386 = vadd.f32 0.0, %v385
        %v387 = vpop.f32.mrf.mxu0
        %388 = vdwg.mxu0
        %389 = vst [vmem:[#allocation1] ss:$4 sm:$0xff] %v311
        %v390 = vld.sshfl [vmem:[#allocation1] sm:$0xff pattern:$0x73625140]
        %v392 = vld.sshfl [vmem:[#allocation1 + $0x8] sm:$0xff pattern:$0x73625140]
        %v394 = vld.sshfl [vmem:[#allocation1 + $0x10] sm:$0xff pattern:$0x73625140]
        %v396 = vld.sshfl [vmem:[#allocation1 + $0x18] sm:$0xff pattern:$0x73625140]
        %398 = vrot.lane.b32.xlu0 %v390, 19
        %v399 = vpop.permute.xlu0 %398
        %400 = vrot.lane.b32.xlu0 %v392, 19
        %v401 = vpop.permute.xlu0 %400
        %402 = vrot.lane.b32.xlu0 %v394, 19
        %v403 = vpop.permute.xlu0 %402
        %404 = vrot.lane.b32.xlu0 %v396, 19
        %v405 = vpop.permute.xlu0 %404
        %vm406 = vcmask 154624
        %v407 = vsel %vm406, %v399, %v401
        %v408 = vsel %vm406, %v401, %v403
        %v409 = vsel %vm406, %v403, %v405
        %v411 = vsel %vm336, %v310, 0
        %v414 = vsel %vm340, %v407, 0
        %v417 = vsel %vm340, %v408, 0
        %v420 = vsel %vm340, %v409, 0
        %422 = vmatpush.bf16.msra.mxu0 0
        %423 = vmatpush.bf16.msra.mxu0 0
        %424 = vmatpush.bf16.msra.mxu0 0
        %425 = vmatpush.bf16.msra.mxu0 0
        %426 = vmatpush.bf16.msra.mxu0 0
        %427 = vmatpush.bf16.msra.mxu0 0
        %428 = vmatpush.bf16.msra.mxu0 0
        %429 = vmatpush.bf16.msra.mxu0 %v414
        %430 = vmatmul.bf16.gmra.mxu0 %v411
        %v431 = vpop.f32.mrf.mxu0
        %v432 = vadd.f32 %v360, %v431
        %v433 = vpop.f32.mrf.mxu0
        %434 = vdwg.mxu0
        %435 = vmatpush.bf16.msra.mxu0 0
        %436 = vmatpush.bf16.msra.mxu0 0
        %437 = vmatpush.bf16.msra.mxu0 0
        %438 = vmatpush.bf16.msra.mxu0 0
        %439 = vmatpush.bf16.msra.mxu0 0
        %440 = vmatpush.bf16.msra.mxu0 0
        %441 = vmatpush.bf16.msra.mxu0 0
        %442 = vmatpush.bf16.msra.mxu0 %v417
        %443 = vmatmul.bf16.gmra.mxu0 %v411
        %v444 = vpop.f32.mrf.mxu0
        %v445 = vadd.f32 %v373, %v444
        %v446 = vpop.f32.mrf.mxu0
        %447 = vdwg.mxu0
        %448 = vmatpush.bf16.msra.mxu0 0
        %449 = vmatpush.bf16.msra.mxu0 0
        %450 = vmatpush.bf16.msra.mxu0 0
        %451 = vmatpush.bf16.msra.mxu0 0
        %452 = vmatpush.bf16.msra.mxu0 0
        %453 = vmatpush.bf16.msra.mxu0 0
        %454 = vmatpush.bf16.msra.mxu0 0
        %455 = vmatpush.bf16.msra.mxu0 %v420
        %456 = vmatmul.bf16.gmra.mxu0 %v411
        %v457 = vpop.f32.mrf.mxu0
        %v458 = vadd.f32 %v386, %v457
        %v459 = vpop.f32.mrf.mxu0
        %460 = vdwg.mxu0
        %s461 = scalar_lea.vmem %s1, 8
        %v462 = vld [vmem:[%s461] sm:$0xf]
        %v463 = vld [vmem:[%s303] sm:$0xff]
        %465 = vst [vmem:[#allocation1] ss:$4 sm:$0xff] %v463
        %v466 = vld.sshfl [vmem:[#allocation1] sm:$0xff pattern:$0x73625140]
        %v468 = vld.sshfl [vmem:[#allocation1 + $0x8] sm:$0xff pattern:$0x73625140]
        %v470 = vld.sshfl [vmem:[#allocation1 + $0x10] sm:$0xff pattern:$0x73625140]
        %v472 = vld.sshfl [vmem:[#allocation1 + $0x18] sm:$0xff pattern:$0x73625140]
        %474 = vrot.lane.b32.xlu0 %v466, 17
        %v475 = vpop.permute.xlu0 %474
        %476 = vrot.lane.b32.xlu0 %v468, 17
        %v477 = vpop.permute.xlu0 %476
        %478 = vrot.lane.b32.xlu0 %v470, 17
        %v479 = vpop.permute.xlu0 %478
        %480 = vrot.lane.b32.xlu0 %v472, 17
        %v481 = vpop.permute.xlu0 %480
        %vm482 = vcmask 138240
        %v483 = vsel %vm482, %v475, %v477
        %v484 = vsel %vm482, %v477, %v479
        %v485 = vsel %vm482, %v479, %v481
        %v487 = vsel %vm336, %v462, 0
        %v490 = vsel %vm340, %v483, 0
        %v493 = vsel %vm340, %v484, 0
        %v496 = vsel %vm340, %v485, 0
        %498 = vmatpush.bf16.msra.mxu0 0
        %499 = vmatpush.bf16.msra.mxu0 0
        %500 = vmatpush.bf16.msra.mxu0 0
        %501 = vmatpush.bf16.msra.mxu0 0
        %502 = vmatpush.bf16.msra.mxu0 0
        %503 = vmatpush.bf16.msra.mxu0 0
        %504 = vmatpush.bf16.msra.mxu0 0
        %505 = vmatpush.bf16.msra.mxu0 %v490
        %506 = vmatmul.bf16.gmra.mxu0 %v487
        %v507 = vpop.f32.mrf.mxu0
        %v508 = vadd.f32 0.0, %v507
        %v509 = vpop.f32.mrf.mxu0
        %510 = vdwg.mxu0
        %511 = vmatpush.bf16.msra.mxu0 0
        %512 = vmatpush.bf16.msra.mxu0 0
        %513 = vmatpush.bf16.msra.mxu0 0
        %514 = vmatpush.bf16.msra.mxu0 0
        %515 = vmatpush.bf16.msra.mxu0 0
        %516 = vmatpush.bf16.msra.mxu0 0
        %517 = vmatpush.bf16.msra.mxu0 0
        %518 = vmatpush.bf16.msra.mxu0 %v493
        %519 = vmatmul.bf16.gmra.mxu0 %v487
        %v520 = vpop.f32.mrf.mxu0
        %v521 = vadd.f32 0.0, %v520
        %v522 = vpop.f32.mrf.mxu0
        %523 = vdwg.mxu0
        %524 = vmatpush.bf16.msra.mxu0 0
        %525 = vmatpush.bf16.msra.mxu0 0
        %526 = vmatpush.bf16.msra.mxu0 0
        %527 = vmatpush.bf16.msra.mxu0 0
        %528 = vmatpush.bf16.msra.mxu0 0
        %529 = vmatpush.bf16.msra.mxu0 0
        %530 = vmatpush.bf16.msra.mxu0 0
        %531 = vmatpush.bf16.msra.mxu0 %v496
        %532 = vmatmul.bf16.gmra.mxu0 %v487
        %v533 = vpop.f32.mrf.mxu0
        %v534 = vadd.f32 0.0, %v533
        %v535 = vpop.f32.mrf.mxu0
        %536 = vdwg.mxu0
        %v537 = vadd.f32 %v432, %v508
        %v538 = vadd.f32 %v445, %v521
        %v539 = vadd.f32 %v458, %v534
        %s540 = scalar_lea.vmem %s1, 12
        %v541 = vld [vmem:[%s540] sm:$0xf]
        %v542 = vld [vmem:[%s303] sm:$0xff]
        %544 = vst [vmem:[#allocation1] ss:$4 sm:$0xff] %v542
        %v545 = vld.sshfl [vmem:[#allocation1] sm:$0xff pattern:$0x73625140]
        %v547 = vld.sshfl [vmem:[#allocation1 + $0x8] sm:$0xff pattern:$0x73625140]
        %v549 = vld.sshfl [vmem:[#allocation1 + $0x10] sm:$0xff pattern:$0x73625140]
        %v551 = vld.sshfl [vmem:[#allocation1 + $0x18] sm:$0xff pattern:$0x73625140]
        %553 = vrot.lane.b32.xlu0 %v545, 1
        %v554 = vpop.permute.xlu0 %553
        %555 = vrot.lane.b32.xlu0 %v547, 1
        %v556 = vpop.permute.xlu0 %555
        %557 = vrot.lane.b32.xlu0 %v549, 1
        %v558 = vpop.permute.xlu0 %557
        %559 = vrot.lane.b32.xlu0 %v551, 1
        %v560 = vpop.permute.xlu0 %559
        %vm561 = vcmask 7168
        %v562 = vsel %vm561, %v554, %v556
        %v563 = vsel %vm561, %v556, %v558
        %v564 = vsel %vm561, %v558, %v560
        %v566 = vsel %vm336, %v541, 0
        %v569 = vsel %vm340, %v562, 0
        %v572 = vsel %vm340, %v563, 0
        %v575 = vsel %vm340, %v564, 0
        %577 = vmatpush.bf16.msra.mxu0 0
        %578 = vmatpush.bf16.msra.mxu0 0
        %579 = vmatpush.bf16.msra.mxu0 0
        %580 = vmatpush.bf16.msra.mxu0 0
        %581 = vmatpush.bf16.msra.mxu0 0
        %582 = vmatpush.bf16.msra.mxu0 0
        %583 = vmatpush.bf16.msra.mxu0 0
        %584 = vmatpush.bf16.msra.mxu0 %v569
        %585 = vmatmul.bf16.gmra.mxu0 %v566
        %v586 = vpop.f32.mrf.mxu0
        %v587 = vadd.f32 0.0, %v586
        %v588 = vpop.f32.mrf.mxu0
        %589 = vdwg.mxu0
        %590 = vmatpush.bf16.msra.mxu0 0
        %591 = vmatpush.bf16.msra.mxu0 0
        %592 = vmatpush.bf16.msra.mxu0 0
        %593 = vmatpush.bf16.msra.mxu0 0
        %594 = vmatpush.bf16.msra.mxu0 0
        %595 = vmatpush.bf16.msra.mxu0 0
        %596 = vmatpush.bf16.msra.mxu0 0
        %597 = vmatpush.bf16.msra.mxu0 %v572
        %598 = vmatmul.bf16.gmra.mxu0 %v566
        %v599 = vpop.f32.mrf.mxu0
        %v600 = vadd.f32 0.0, %v599
        %v601 = vpop.f32.mrf.mxu0
        %602 = vdwg.mxu0
        %603 = vmatpush.bf16.msra.mxu0 0
        %604 = vmatpush.bf16.msra.mxu0 0
        %605 = vmatpush.bf16.msra.mxu0 0
        %606 = vmatpush.bf16.msra.mxu0 0
        %607 = vmatpush.bf16.msra.mxu0 0
        %608 = vmatpush.bf16.msra.mxu0 0
        %609 = vmatpush.bf16.msra.mxu0 0
        %610 = vmatpush.bf16.msra.mxu0 %v575
        %611 = vmatmul.bf16.gmra.mxu0 %v566
        %v612 = vpop.f32.mrf.mxu0
        %v613 = vadd.f32 0.0, %v612
        %v614 = vpop.f32.mrf.mxu0
        %615 = vdwg.mxu0
        %v616 = vadd.f32 %v537, %v587
        %v617 = vadd.f32 %v538, %v600
        %v618 = vadd.f32 %v539, %v613
        %s619 = scalar_lea.vmem %s1, 16
        %v620 = vld [vmem:[%s619] sm:$0xf]
        %v621 = vld [vmem:[%s303 + $0x2] sm:$0x3f]
        %623 = vst [vmem:[#allocation1] ss:$4 sm:$0xff] %v621
        %v624 = vld.sshfl [vmem:[#allocation1] sm:$0xff pattern:$0x73625140]
        %v625 = vld.sshfl [vmem:[#allocation1 + $0x8] sm:$0xff pattern:$0x73625140]
        %v626 = vld.sshfl [vmem:[#allocation1 + $0x10] sm:$0xff pattern:$0x73625140]
        %v628 = vsel %vm336, %v620, 0
        %v630 = vsel %vm340, %v624, 0
        %v632 = vsel %vm340, %v625, 0
        %v634 = vsel %vm340, %v626, 0
        %636 = vmatpush.bf16.msra.mxu0 0
        %637 = vmatpush.bf16.msra.mxu0 0
        %638 = vmatpush.bf16.msra.mxu0 0
        %639 = vmatpush.bf16.msra.mxu0 0
        %640 = vmatpush.bf16.msra.mxu0 0
        %641 = vmatpush.bf16.msra.mxu0 0
        %642 = vmatpush.bf16.msra.mxu0 0
        %643 = vmatpush.bf16.msra.mxu0 %v630
        %644 = vmatmul.bf16.gmra.mxu0 %v628
        %v645 = vpop.f32.mrf.mxu0
        %v646 = vadd.f32 0.0, %v645
        %v647 = vpop.f32.mrf.mxu0
        %648 = vdwg.mxu0
        %649 = vmatpush.bf16.msra.mxu0 0
        %650 = vmatpush.bf16.msra.mxu0 0
        %651 = vmatpush.bf16.msra.mxu0 0
        %652 = vmatpush.bf16.msra.mxu0 0
        %653 = vmatpush.bf16.msra.mxu0 0
        %654 = vmatpush.bf16.msra.mxu0 0
        %655 = vmatpush.bf16.msra.mxu0 0
        %656 = vmatpush.bf16.msra.mxu0 %v632
        %657 = vmatmul.bf16.gmra.mxu0 %v628
        %v658 = vpop.f32.mrf.mxu0
        %v659 = vadd.f32 0.0, %v658
        %v660 = vpop.f32.mrf.mxu0
        %661 = vdwg.mxu0
        %662 = vmatpush.bf16.msra.mxu0 0
        %663 = vmatpush.bf16.msra.mxu0 0
        %664 = vmatpush.bf16.msra.mxu0 0
        %665 = vmatpush.bf16.msra.mxu0 0
        %666 = vmatpush.bf16.msra.mxu0 0
        %667 = vmatpush.bf16.msra.mxu0 0
        %668 = vmatpush.bf16.msra.mxu0 0
        %669 = vmatpush.bf16.msra.mxu0 %v634
        %670 = vmatmul.bf16.gmra.mxu0 %v628
        %v671 = vpop.f32.mrf.mxu0
        %v672 = vadd.f32 0.0, %v671
        %v673 = vpop.f32.mrf.mxu0
        %674 = vdwg.mxu0
        %v675 = vadd.f32 %v616, %v646
        %v676 = vadd.f32 %v617, %v659
        %v677 = vadd.f32 %v618, %v672
        %s678 = scalar_lea.vmem %s1, 20
        %v679 = vld [vmem:[%s678] sm:$0xf]
        %v680 = vld [vmem:[%s303 + $0x2] sm:$0xff]
        %682 = vst [vmem:[#allocation1] ss:$4 sm:$0xff] %v680
        %v683 = vld.sshfl [vmem:[#allocation1] sm:$0xff pattern:$0x73625140]
        %v685 = vld.sshfl [vmem:[#allocation1 + $0x8] sm:$0xff pattern:$0x73625140]
        %v687 = vld.sshfl [vmem:[#allocation1 + $0x10] sm:$0xff pattern:$0x73625140]
        %v689 = vld.sshfl [vmem:[#allocation1 + $0x18] sm:$0xff pattern:$0x73625140]
        %691 = vrot.lane.b32.xlu0 %v683, 127
        %v692 = vpop.permute.xlu0 %691
        %693 = vrot.lane.b32.xlu0 %v685, 127
        %v694 = vpop.permute.xlu0 %693
        %695 = vrot.lane.b32.xlu0 %v687, 127
        %v696 = vpop.permute.xlu0 %695
        %697 = vrot.lane.b32.xlu0 %v689, 127
        %v698 = vpop.permute.xlu0 %697
        %vm699 = vcmask 1039360
        %v700 = vsel %vm699, %v692, %v694
        %v701 = vsel %vm699, %v694, %v696
        %v702 = vsel %vm699, %v696, %v698
        %v704 = vsel %vm336, %v679, 0
        %v707 = vsel %vm340, %v700, 0
        %v710 = vsel %vm340, %v701, 0
        %v713 = vsel %vm340, %v702, 0
        %715 = vmatpush.bf16.msra.mxu0 0
        %716 = vmatpush.bf16.msra.mxu0 0
        %717 = vmatpush.bf16.msra.mxu0 0
        %718 = vmatpush.bf16.msra.mxu0 0
        %719 = vmatpush.bf16.msra.mxu0 0
        %720 = vmatpush.bf16.msra.mxu0 0
        %721 = vmatpush.bf16.msra.mxu0 0
        %722 = vmatpush.bf16.msra.mxu0 %v707
        %723 = vmatmul.bf16.gmra.mxu0 %v704
        %v724 = vpop.f32.mrf.mxu0
        %v725 = vadd.f32 0.0, %v724
        %v726 = vpop.f32.mrf.mxu0
        %727 = vdwg.mxu0
        %728 = vmatpush.bf16.msra.mxu0 0
        %729 = vmatpush.bf16.msra.mxu0 0
        %730 = vmatpush.bf16.msra.mxu0 0
        %731 = vmatpush.bf16.msra.mxu0 0
        %732 = vmatpush.bf16.msra.mxu0 0
        %733 = vmatpush.bf16.msra.mxu0 0
        %734 = vmatpush.bf16.msra.mxu0 0
        %735 = vmatpush.bf16.msra.mxu0 %v710
        %736 = vmatmul.bf16.gmra.mxu0 %v704
        %v737 = vpop.f32.mrf.mxu0
        %v738 = vadd.f32 0.0, %v737
        %v739 = vpop.f32.mrf.mxu0
        %740 = vdwg.mxu0
        %741 = vmatpush.bf16.msra.mxu0 0
        %742 = vmatpush.bf16.msra.mxu0 0
        %743 = vmatpush.bf16.msra.mxu0 0
        %744 = vmatpush.bf16.msra.mxu0 0
        %745 = vmatpush.bf16.msra.mxu0 0
        %746 = vmatpush.bf16.msra.mxu0 0
        %747 = vmatpush.bf16.msra.mxu0 0
        %748 = vmatpush.bf16.msra.mxu0 %v713
        %749 = vmatmul.bf16.gmra.mxu0 %v704
        %v750 = vpop.f32.mrf.mxu0
        %v751 = vadd.f32 0.0, %v750
        %v752 = vpop.f32.mrf.mxu0
        %753 = vdwg.mxu0
        %v754 = vadd.f32 %v675, %v725
        %v755 = vadd.f32 %v676, %v738
        %v756 = vadd.f32 %v677, %v751
        %s757 = scalar_lea.vmem %s1, 24
        %v758 = vld [vmem:[%s757] sm:$0xf]
        %v759 = vld [vmem:[%s303 + $0x2] sm:$0xff]
        %761 = vst [vmem:[#allocation1] ss:$4 sm:$0xff] %v759
        %v762 = vld.sshfl [vmem:[#allocation1] sm:$0xff pattern:$0x73625140]
        %v764 = vld.sshfl [vmem:[#allocation1 + $0x8] sm:$0xff pattern:$0x73625140]
        %v766 = vld.sshfl [vmem:[#allocation1 + $0x10] sm:$0xff pattern:$0x73625140]
        %v768 = vld.sshfl [vmem:[#allocation1 + $0x18] sm:$0xff pattern:$0x73625140]
        %770 = vrot.lane.b32.xlu0 %v762, 111
        %v771 = vpop.permute.xlu0 %770
        %772 = vrot.lane.b32.xlu0 %v764, 111
        %v773 = vpop.permute.xlu0 %772
        %774 = vrot.lane.b32.xlu0 %v766, 111
        %v775 = vpop.permute.xlu0 %774
        %776 = vrot.lane.b32.xlu0 %v768, 111
        %v777 = vpop.permute.xlu0 %776
        %vm778 = vcmask 908288
        %v779 = vsel %vm778, %v771, %v773
        %v780 = vsel %vm778, %v773, %v775
        %v781 = vsel %vm778, %v775, %v777
        %v783 = vsel %vm336, %v758, 0
        %v786 = vsel %vm340, %v779, 0
        %v789 = vsel %vm340, %v780, 0
        %v792 = vsel %vm340, %v781, 0
        %794 = vmatpush.bf16.msra.mxu0 0
        %795 = vmatpush.bf16.msra.mxu0 0
        %796 = vmatpush.bf16.msra.mxu0 0
        %797 = vmatpush.bf16.msra.mxu0 0
        %798 = vmatpush.bf16.msra.mxu0 0
        %799 = vmatpush.bf16.msra.mxu0 0
        %800 = vmatpush.bf16.msra.mxu0 0
        %801 = vmatpush.bf16.msra.mxu0 %v786
        %802 = vmatmul.bf16.gmra.mxu0 %v783
        %v803 = vpop.f32.mrf.mxu0
        %v804 = vadd.f32 0.0, %v803
        %v805 = vpop.f32.mrf.mxu0
        %806 = vdwg.mxu0
        %807 = vmatpush.bf16.msra.mxu0 0
        %808 = vmatpush.bf16.msra.mxu0 0
        %809 = vmatpush.bf16.msra.mxu0 0
        %810 = vmatpush.bf16.msra.mxu0 0
        %811 = vmatpush.bf16.msra.mxu0 0
        %812 = vmatpush.bf16.msra.mxu0 0
        %813 = vmatpush.bf16.msra.mxu0 0
        %814 = vmatpush.bf16.msra.mxu0 %v789
        %815 = vmatmul.bf16.gmra.mxu0 %v783
        %v816 = vpop.f32.mrf.mxu0
        %v817 = vadd.f32 0.0, %v816
        %v818 = vpop.f32.mrf.mxu0
        %819 = vdwg.mxu0
        %820 = vmatpush.bf16.msra.mxu0 0
        %821 = vmatpush.bf16.msra.mxu0 0
        %822 = vmatpush.bf16.msra.mxu0 0
        %823 = vmatpush.bf16.msra.mxu0 0
        %824 = vmatpush.bf16.msra.mxu0 0
        %825 = vmatpush.bf16.msra.mxu0 0
        %826 = vmatpush.bf16.msra.mxu0 0
        %827 = vmatpush.bf16.msra.mxu0 %v792
        %828 = vmatmul.bf16.gmra.mxu0 %v783
        %v829 = vpop.f32.mrf.mxu0
        %v830 = vadd.f32 0.0, %v829
        %v831 = vpop.f32.mrf.mxu0
        %832 = vdwg.mxu0
        %v833 = vadd.f32 %v754, %v804
        %v834 = vadd.f32 %v755, %v817
        %v835 = vadd.f32 %v756, %v830
        %s836 = scalar_lea.vmem %s1, 28
        %v837 = vld [vmem:[%s836] sm:$0xf]
        %v838 = vld [vmem:[%s303 + $0x2] sm:$0xff]
        %840 = vst [vmem:[#allocation1] ss:$4 sm:$0xff] %v838
        %v841 = vld.sshfl [vmem:[#allocation1] sm:$0xff pattern:$0x73625140]
        %v843 = vld.sshfl [vmem:[#allocation1 + $0x8] sm:$0xff pattern:$0x73625140]
        %v845 = vld.sshfl [vmem:[#allocation1 + $0x10] sm:$0xff pattern:$0x73625140]
        %v847 = vld.sshfl [vmem:[#allocation1 + $0x18] sm:$0xff pattern:$0x73625140]
        %849 = vrot.lane.b32.xlu0 %v841, 110
        %v850 = vpop.permute.xlu0 %849
        %851 = vrot.lane.b32.xlu0 %v843, 110
        %v852 = vpop.permute.xlu0 %851
        %853 = vrot.lane.b32.xlu0 %v845, 110
        %v854 = vpop.permute.xlu0 %853
        %855 = vrot.lane.b32.xlu0 %v847, 110
        %v856 = vpop.permute.xlu0 %855
        %vm857 = vcmask 900096
        %v858 = vsel %vm857, %v850, %v852
        %v859 = vsel %vm857, %v852, %v854
        %v860 = vsel %vm857, %v854, %v856
        %v862 = vsel %vm336, %v837, 0
        %v865 = vsel %vm340, %v858, 0
        %v868 = vsel %vm340, %v859, 0
        %v871 = vsel %vm340, %v860, 0
        %873 = vmatpush.bf16.msra.mxu0 0
        %874 = vmatpush.bf16.msra.mxu0 0
        %875 = vmatpush.bf16.msra.mxu0 0
        %876 = vmatpush.bf16.msra.mxu0 0
        %877 = vmatpush.bf16.msra.mxu0 0
        %878 = vmatpush.bf16.msra.mxu0 0
        %879 = vmatpush.bf16.msra.mxu0 0
        %880 = vmatpush.bf16.msra.mxu0 %v865
        %881 = vmatmul.bf16.gmra.mxu0 %v862
        %v882 = vpop.f32.mrf.mxu0
        %v883 = vadd.f32 0.0, %v882
        %v884 = vpop.f32.mrf.mxu0
        %885 = vdwg.mxu0
        %886 = vmatpush.bf16.msra.mxu0 0
        %887 = vmatpush.bf16.msra.mxu0 0
        %888 = vmatpush.bf16.msra.mxu0 0
        %889 = vmatpush.bf16.msra.mxu0 0
        %890 = vmatpush.bf16.msra.mxu0 0
        %891 = vmatpush.bf16.msra.mxu0 0
        %892 = vmatpush.bf16.msra.mxu0 0
        %893 = vmatpush.bf16.msra.mxu0 %v868
        %894 = vmatmul.bf16.gmra.mxu0 %v862
        %v895 = vpop.f32.mrf.mxu0
        %v896 = vadd.f32 0.0, %v895
        %v897 = vpop.f32.mrf.mxu0
        %898 = vdwg.mxu0
        %899 = vmatpush.bf16.msra.mxu0 0
        %900 = vmatpush.bf16.msra.mxu0 0
        %901 = vmatpush.bf16.msra.mxu0 0
        %902 = vmatpush.bf16.msra.mxu0 0
        %903 = vmatpush.bf16.msra.mxu0 0
        %904 = vmatpush.bf16.msra.mxu0 0
        %905 = vmatpush.bf16.msra.mxu0 0
        %906 = vmatpush.bf16.msra.mxu0 %v871
        %907 = vmatmul.bf16.gmra.mxu0 %v862
        %v908 = vpop.f32.mrf.mxu0
        %v909 = vadd.f32 0.0, %v908
        %v910 = vpop.f32.mrf.mxu0
        %911 = vdwg.mxu0
        %v912 = vadd.f32 %v833, %v883
        %v913 = vadd.f32 %v834, %v896
        %v914 = vadd.f32 %v835, %v909
        %s915 = scalar_lea.vmem %s1, 32
        %v916 = vld [vmem:[%s915] sm:$0xf]
        %v917 = vld [vmem:[%s303 + $0x2] sm:$0xff]
        %919 = vst [vmem:[#allocation1] ss:$4 sm:$0xff] %v917
        %v920 = vld.sshfl [vmem:[#allocation1] sm:$0xff pattern:$0x73625140]
        %v922 = vld.sshfl [vmem:[#allocation1 + $0x8] sm:$0xff pattern:$0x73625140]
        %v924 = vld.sshfl [vmem:[#allocation1 + $0x10] sm:$0xff pattern:$0x73625140]
        %v926 = vld.sshfl [vmem:[#allocation1 + $0x18] sm:$0xff pattern:$0x73625140]
        %928 = vrot.lane.b32.xlu0 %v920, 109
        %v929 = vpop.permute.xlu0 %928
        %930 = vrot.lane.b32.xlu0 %v922, 109
        %v931 = vpop.permute.xlu0 %930
        %932 = vrot.lane.b32.xlu0 %v924, 109
        %v933 = vpop.permute.xlu0 %932
        %934 = vrot.lane.b32.xlu0 %v926, 109
        %v935 = vpop.permute.xlu0 %934
        %vm936 = vcmask 891904
        %v937 = vsel %vm936, %v929, %v931
        %v938 = vsel %vm936, %v931, %v933
        %v939 = vsel %vm936, %v933, %v935
        %v941 = vsel %vm336, %v916, 0
        %v944 = vsel %vm340, %v937, 0
        %v947 = vsel %vm340, %v938, 0
        %v950 = vsel %vm340, %v939, 0
        %952 = vmatpush.bf16.msra.mxu0 0
        %953 = vmatpush.bf16.msra.mxu0 0
        %954 = vmatpush.bf16.msra.mxu0 0
        %955 = vmatpush.bf16.msra.mxu0 0
        %956 = vmatpush.bf16.msra.mxu0 0
        %957 = vmatpush.bf16.msra.mxu0 0
        %958 = vmatpush.bf16.msra.mxu0 0
        %959 = vmatpush.bf16.msra.mxu0 %v944
        %960 = vmatmul.bf16.gmra.mxu0 %v941
        %v961 = vpop.f32.mrf.mxu0
        %v962 = vadd.f32 0.0, %v961
        %v963 = vpop.f32.mrf.mxu0
        %964 = vdwg.mxu0
        %965 = vmatpush.bf16.msra.mxu0 0
        %966 = vmatpush.bf16.msra.mxu0 0
        %967 = vmatpush.bf16.msra.mxu0 0
        %968 = vmatpush.bf16.msra.mxu0 0
        %969 = vmatpush.bf16.msra.mxu0 0
        %970 = vmatpush.bf16.msra.mxu0 0
        %971 = vmatpush.bf16.msra.mxu0 0
        %972 = vmatpush.bf16.msra.mxu0 %v947
        %973 = vmatmul.bf16.gmra.mxu0 %v941
        %v974 = vpop.f32.mrf.mxu0
        %v975 = vadd.f32 0.0, %v974
        %v976 = vpop.f32.mrf.mxu0
        %977 = vdwg.mxu0
        %978 = vmatpush.bf16.msra.mxu0 0
        %979 = vmatpush.bf16.msra.mxu0 0
        %980 = vmatpush.bf16.msra.mxu0 0
        %981 = vmatpush.bf16.msra.mxu0 0
        %982 = vmatpush.bf16.msra.mxu0 0
        %983 = vmatpush.bf16.msra.mxu0 0
        %984 = vmatpush.bf16.msra.mxu0 0
        %985 = vmatpush.bf16.msra.mxu0 %v950
        %986 = vmatmul.bf16.gmra.mxu0 %v941
        %v987 = vpop.f32.mrf.mxu0
        %v988 = vadd.f32 0.0, %v987
        %v989 = vpop.f32.mrf.mxu0
        %990 = vdwg.mxu0
        %v991 = vadd.f32 %v912, %v962
        %v992 = vadd.f32 %v913, %v975
        %v993 = vadd.f32 %v914, %v988
        %v994 = vld [vmem:[%s2] sm:$0xff]
        %996 = vset.pattern.permute.xlu0 0
        %997 = vperm.xlu0 %996, %v994
        %v998 = vpop.permute.xlu0 %997
        %v1000 = vadd.f32 %v991, %v998
        %v1001 = vadd.f32 %v992, %v998
        %v1002 = vadd.f32 %v993, %v998
        %v1003 = vmax.f32 %v1000, 0.0
        %v1004 = vmax.f32 %v1001, 0.0
        %v1005 = vmax.f32 %v1002, 0.0
        %v1007 = vperm.slane %v305, 0
        %v1008 = vperm.slane %v305, 1
        %v1009 = vperm.slane %v305, 2
        %v1013 = vmul.f32 %v1003, %v1007
        %v1014 = vmul.f32 %v1004, %v1008
        %v1015 = vmul.f32 %v1005, %v1009
        %v1016 = vpack.c.bf16 %v1014, %v1013
        %v1017 = vpack.c.bf16 %v1015, %v1015
        %1018 = vst [vmem:[#allocation2 + $0x4] sm:$0xff] %v1016
        %1019 = vst [vmem:[#allocation2 + $0xc] sm:$0xf] %v1017
        %v1020 = vld [vmem:[%s3] sm:$0xf]
        %v1021 = vld [vmem:[#allocation2] sm:$0xff]
        %v1022 = vld [vmem:[#allocation2 + $0x8] sm:$0xff]
        %s1023 = scalar_lea.vmem %s3, 4
        %v1024 = vld [vmem:[%s1023] sm:$0xf]
        %v1027 = vunpack.c.l.b16 %v1021
        %v1028 = vunpack.c.h.b16 %v1021
        %v1029 = vunpack.c.l.b16 %v1022
        %v1030 = vunpack.c.h.b16 %v1022
        %v1031 = vpack.c.b16 %v1027, %v1027
        %v1032 = vpack.c.b16 %v1028, %v1028
        %v1033 = vpack.c.b16 %v1029, %v1029
        %v1034 = vpack.c.b16 %v1030, %v1030
        %1035 = vrot.lane.b32.xlu0 %v1031, 18
        %v1036 = vpop.permute.xlu0 %1035
        %1037 = vrot.lane.b32.xlu0 %v1032, 18
        %v1038 = vpop.permute.xlu0 %1037
        %1039 = vrot.lane.b32.xlu0 %v1033, 18
        %v1040 = vpop.permute.xlu0 %1039
        %1041 = vrot.lane.b32.xlu0 %v1034, 18
        %v1042 = vpop.permute.xlu0 %1041
        %v1043 = vsel %vm332, %v1036, %v1038
        %v1044 = vsel %vm332, %v1038, %v1040
        %v1045 = vsel %vm332, %v1040, %v1042
        %vm1046 = vcmask 64512
        %v1048 = vsel %vm1046, %v1024, 0
        %vm1050 = vcmask 1043456
        %v1052 = vsel %vm1050, %v1043, 0
        %v1055 = vsel %vm1050, %v1044, 0
        %v1058 = vsel %vm1050, %v1045, 0
        %1060 = vmatpush.bf16.msra.mxu0 0
        %1061 = vmatpush.bf16.msra.mxu0 0
        %1062 = vmatpush.bf16.msra.mxu0 0
        %1063 = vmatpush.bf16.msra.mxu0 0
        %1064 = vmatpush.bf16.msra.mxu0 0
        %1065 = vmatpush.bf16.msra.mxu0 0
        %1066 = vmatpush.bf16.msra.mxu0 0
        %1067 = vmatpush.bf16.msra.mxu0 %v1052
        %1068 = vmatmul.bf16.gmra.mxu0 %v1048
        %v1069 = vpop.f32.mrf.mxu0
        %v1070 = vadd.f32 0.0, %v1069
        %v1071 = vpop.f32.mrf.mxu0
        %1072 = vdwg.mxu0
        %1073 = vmatpush.bf16.msra.mxu0 0
        %1074 = vmatpush.bf16.msra.mxu0 0
        %1075 = vmatpush.bf16.msra.mxu0 0
        %1076 = vmatpush.bf16.msra.mxu0 0
        %1077 = vmatpush.bf16.msra.mxu0 0
        %1078 = vmatpush.bf16.msra.mxu0 0
        %1079 = vmatpush.bf16.msra.mxu0 0
        %1080 = vmatpush.bf16.msra.mxu0 %v1055
        %1081 = vmatmul.bf16.gmra.mxu0 %v1048
        %v1082 = vpop.f32.mrf.mxu0
        %v1083 = vadd.f32 0.0, %v1082
        %v1084 = vpop.f32.mrf.mxu0
        %1085 = vdwg.mxu0
        %1086 = vmatpush.bf16.msra.mxu0 0
        %1087 = vmatpush.bf16.msra.mxu0 0
        %1088 = vmatpush.bf16.msra.mxu0 0
        %1089 = vmatpush.bf16.msra.mxu0 0
        %1090 = vmatpush.bf16.msra.mxu0 0
        %1091 = vmatpush.bf16.msra.mxu0 0
        %1092 = vmatpush.bf16.msra.mxu0 0
        %1093 = vmatpush.bf16.msra.mxu0 %v1058
        %1094 = vmatmul.bf16.gmra.mxu0 %v1048
        %v1095 = vpop.f32.mrf.mxu0
        %v1096 = vadd.f32 0.0, %v1095
        %v1097 = vpop.f32.mrf.mxu0
        %1098 = vdwg.mxu0
        %1099 = vrot.lane.b32.xlu0 %v1031, 19
        %v1100 = vpop.permute.xlu0 %1099
        %1101 = vrot.lane.b32.xlu0 %v1032, 19
        %v1102 = vpop.permute.xlu0 %1101
        %1103 = vrot.lane.b32.xlu0 %v1033, 19
        %v1104 = vpop.permute.xlu0 %1103
        %1105 = vrot.lane.b32.xlu0 %v1034, 19
        %v1106 = vpop.permute.xlu0 %1105
        %v1107 = vsel %vm406, %v1100, %v1102
        %v1108 = vsel %vm406, %v1102, %v1104
        %v1109 = vsel %vm406, %v1104, %v1106
        %v1111 = vsel %vm1046, %v1020, 0
        %v1114 = vsel %vm1050, %v1107, 0
        %v1117 = vsel %vm1050, %v1108, 0
        %v1120 = vsel %vm1050, %v1109, 0
        %1122 = vmatpush.bf16.msra.mxu0 0
        %1123 = vmatpush.bf16.msra.mxu0 0
        %1124 = vmatpush.bf16.msra.mxu0 0
        %1125 = vmatpush.bf16.msra.mxu0 0
        %1126 = vmatpush.bf16.msra.mxu0 0
        %1127 = vmatpush.bf16.msra.mxu0 0
        %1128 = vmatpush.bf16.msra.mxu0 0
        %1129 = vmatpush.bf16.msra.mxu0 %v1114
        %1130 = vmatmul.bf16.gmra.mxu0 %v1111
        %v1131 = vpop.f32.mrf.mxu0
        %v1132 = vadd.f32 %v1070, %v1131
        %v1133 = vpop.f32.mrf.mxu0
        %1134 = vdwg.mxu0
        %1135 = vmatpush.bf16.msra.mxu0 0
        %1136 = vmatpush.bf16.msra.mxu0 0
        %1137 = vmatpush.bf16.msra.mxu0 0
        %1138 = vmatpush.bf16.msra.mxu0 0
        %1139 = vmatpush.bf16.msra.mxu0 0
        %1140 = vmatpush.bf16.msra.mxu0 0
        %1141 = vmatpush.bf16.msra.mxu0 0
        %1142 = vmatpush.bf16.msra.mxu0 %v1117
        %1143 = vmatmul.bf16.gmra.mxu0 %v1111
        %v1144 = vpop.f32.mrf.mxu0
        %v1145 = vadd.f32 %v1083, %v1144
        %v1146 = vpop.f32.mrf.mxu0
        %1147 = vdwg.mxu0
        %1148 = vmatpush.bf16.msra.mxu0 0
        %1149 = vmatpush.bf16.msra.mxu0 0
        %1150 = vmatpush.bf16.msra.mxu0 0
        %1151 = vmatpush.bf16.msra.mxu0 0
        %1152 = vmatpush.bf16.msra.mxu0 0
        %1153 = vmatpush.bf16.msra.mxu0 0
        %1154 = vmatpush.bf16.msra.mxu0 0
        %1155 = vmatpush.bf16.msra.mxu0 %v1120
        %1156 = vmatmul.bf16.gmra.mxu0 %v1111
        %v1157 = vpop.f32.mrf.mxu0
        %v1158 = vadd.f32 %v1096, %v1157
        %v1159 = vpop.f32.mrf.mxu0
        %1160 = vdwg.mxu0
        %s1161 = scalar_lea.vmem %s3, 8
        %v1162 = vld [vmem:[%s1161] sm:$0xf]
        %1163 = vrot.lane.b32.xlu0 %v1031, 17
        %v1164 = vpop.permute.xlu0 %1163
        %1165 = vrot.lane.b32.xlu0 %v1032, 17
        %v1166 = vpop.permute.xlu0 %1165
        %1167 = vrot.lane.b32.xlu0 %v1033, 17
        %v1168 = vpop.permute.xlu0 %1167
        %1169 = vrot.lane.b32.xlu0 %v1034, 17
        %v1170 = vpop.permute.xlu0 %1169
        %v1171 = vsel %vm482, %v1164, %v1166
        %v1172 = vsel %vm482, %v1166, %v1168
        %v1173 = vsel %vm482, %v1168, %v1170
        %v1175 = vsel %vm1046, %v1162, 0
        %v1178 = vsel %vm1050, %v1171, 0
        %v1181 = vsel %vm1050, %v1172, 0
        %v1184 = vsel %vm1050, %v1173, 0
        %1186 = vmatpush.bf16.msra.mxu0 0
        %1187 = vmatpush.bf16.msra.mxu0 0
        %1188 = vmatpush.bf16.msra.mxu0 0
        %1189 = vmatpush.bf16.msra.mxu0 0
        %1190 = vmatpush.bf16.msra.mxu0 0
        %1191 = vmatpush.bf16.msra.mxu0 0
        %1192 = vmatpush.bf16.msra.mxu0 0
        %1193 = vmatpush.bf16.msra.mxu0 %v1178
        %1194 = vmatmul.bf16.gmra.mxu0 %v1175
        %v1195 = vpop.f32.mrf.mxu0
        %v1196 = vadd.f32 0.0, %v1195
        %v1197 = vpop.f32.mrf.mxu0
        %1198 = vdwg.mxu0
        %1199 = vmatpush.bf16.msra.mxu0 0
        %1200 = vmatpush.bf16.msra.mxu0 0
        %1201 = vmatpush.bf16.msra.mxu0 0
        %1202 = vmatpush.bf16.msra.mxu0 0
        %1203 = vmatpush.bf16.msra.mxu0 0
        %1204 = vmatpush.bf16.msra.mxu0 0
        %1205 = vmatpush.bf16.msra.mxu0 0
        %1206 = vmatpush.bf16.msra.mxu0 %v1181
        %1207 = vmatmul.bf16.gmra.mxu0 %v1175
        %v1208 = vpop.f32.mrf.mxu0
        %v1209 = vadd.f32 0.0, %v1208
        %v1210 = vpop.f32.mrf.mxu0
        %1211 = vdwg.mxu0
        %1212 = vmatpush.bf16.msra.mxu0 0
        %1213 = vmatpush.bf16.msra.mxu0 0
        %1214 = vmatpush.bf16.msra.mxu0 0
        %1215 = vmatpush.bf16.msra.mxu0 0
        %1216 = vmatpush.bf16.msra.mxu0 0
        %1217 = vmatpush.bf16.msra.mxu0 0
        %1218 = vmatpush.bf16.msra.mxu0 0
        %1219 = vmatpush.bf16.msra.mxu0 %v1184
        %1220 = vmatmul.bf16.gmra.mxu0 %v1175
        %v1221 = vpop.f32.mrf.mxu0
        %v1222 = vadd.f32 0.0, %v1221
        %v1223 = vpop.f32.mrf.mxu0
        %1224 = vdwg.mxu0
        %v1225 = vadd.f32 %v1132, %v1196
        %v1226 = vadd.f32 %v1145, %v1209
        %v1227 = vadd.f32 %v1158, %v1222
        %s1228 = scalar_lea.vmem %s3, 12
        %v1229 = vld [vmem:[%s1228] sm:$0xf]
        %1230 = vrot.lane.b32.xlu0 %v1031, 1
        %v1231 = vpop.permute.xlu0 %1230
        %1232 = vrot.lane.b32.xlu0 %v1032, 1
        %v1233 = vpop.permute.xlu0 %1232
        %1234 = vrot.lane.b32.xlu0 %v1033, 1
        %v1235 = vpop.permute.xlu0 %1234
        %1236 = vrot.lane.b32.xlu0 %v1034, 1
        %v1237 = vpop.permute.xlu0 %1236
        %v1238 = vsel %vm561, %v1231, %v1233
        %v1239 = vsel %vm561, %v1233, %v1235
        %v1240 = vsel %vm561, %v1235, %v1237
        %v1242 = vsel %vm1046, %v1229, 0
        %v1245 = vsel %vm1050, %v1238, 0
        %v1248 = vsel %vm1050, %v1239, 0
        %v1251 = vsel %vm1050, %v1240, 0
        %1253 = vmatpush.bf16.msra.mxu0 0
        %1254 = vmatpush.bf16.msra.mxu0 0
        %1255 = vmatpush.bf16.msra.mxu0 0
        %1256 = vmatpush.bf16.msra.mxu0 0
        %1257 = vmatpush.bf16.msra.mxu0 0
        %1258 = vmatpush.bf16.msra.mxu0 0
        %1259 = vmatpush.bf16.msra.mxu0 0
        %1260 = vmatpush.bf16.msra.mxu0 %v1245
        %1261 = vmatmul.bf16.gmra.mxu0 %v1242
        %v1262 = vpop.f32.mrf.mxu0
        %v1263 = vadd.f32 0.0, %v1262
        %v1264 = vpop.f32.mrf.mxu0
        %1265 = vdwg.mxu0
        %1266 = vmatpush.bf16.msra.mxu0 0
        %1267 = vmatpush.bf16.msra.mxu0 0
        %1268 = vmatpush.bf16.msra.mxu0 0
        %1269 = vmatpush.bf16.msra.mxu0 0
        %1270 = vmatpush.bf16.msra.mxu0 0
        %1271 = vmatpush.bf16.msra.mxu0 0
        %1272 = vmatpush.bf16.msra.mxu0 0
        %1273 = vmatpush.bf16.msra.mxu0 %v1248
        %1274 = vmatmul.bf16.gmra.mxu0 %v1242
        %v1275 = vpop.f32.mrf.mxu0
        %v1276 = vadd.f32 0.0, %v1275
        %v1277 = vpop.f32.mrf.mxu0
        %1278 = vdwg.mxu0
        %1279 = vmatpush.bf16.msra.mxu0 0
        %1280 = vmatpush.bf16.msra.mxu0 0
        %1281 = vmatpush.bf16.msra.mxu0 0
        %1282 = vmatpush.bf16.msra.mxu0 0
        %1283 = vmatpush.bf16.msra.mxu0 0
        %1284 = vmatpush.bf16.msra.mxu0 0
        %1285 = vmatpush.bf16.msra.mxu0 0
        %1286 = vmatpush.bf16.msra.mxu0 %v1251
        %1287 = vmatmul.bf16.gmra.mxu0 %v1242
        %v1288 = vpop.f32.mrf.mxu0
        %v1289 = vadd.f32 0.0, %v1288
        %v1290 = vpop.f32.mrf.mxu0
        %1291 = vdwg.mxu0
        %v1292 = vadd.f32 %v1225, %v1263
        %v1293 = vadd.f32 %v1226, %v1276
        %v1294 = vadd.f32 %v1227, %v1289
        %s1295 = scalar_lea.vmem %s3, 16
        %v1296 = vld [vmem:[%s1295] sm:$0xf]
        %v1297 = vld [vmem:[#allocation2 + $0x4] sm:$0xff]
        %v1298 = vld [vmem:[#allocation2 + $0xc] sm:$0xf]
        %v1301 = vunpack.c.l.b16 %v1297
        %v1302 = vunpack.c.h.b16 %v1297
        %v1303 = vunpack.c.l.b16 %v1298
        %v1304 = vpack.c.b16 %v1301, %v1301
        %v1305 = vpack.c.b16 %v1302, %v1302
        %v1306 = vpack.c.b16 %v1303, %v1303
        %v1308 = vsel %vm1046, %v1296, 0
        %v1311 = vsel %vm1050, %v1304, 0
        %v1314 = vsel %vm1050, %v1305, 0
        %v1317 = vsel %vm1050, %v1306, 0
        %1319 = vmatpush.bf16.msra.mxu0 0
        %1320 = vmatpush.bf16.msra.mxu0 0
        %1321 = vmatpush.bf16.msra.mxu0 0
        %1322 = vmatpush.bf16.msra.mxu0 0
        %1323 = vmatpush.bf16.msra.mxu0 0
        %1324 = vmatpush.bf16.msra.mxu0 0
        %1325 = vmatpush.bf16.msra.mxu0 0
        %1326 = vmatpush.bf16.msra.mxu0 %v1311
        %1327 = vmatmul.bf16.gmra.mxu0 %v1308
        %v1328 = vpop.f32.mrf.mxu0
        %v1329 = vadd.f32 0.0, %v1328
        %v1330 = vpop.f32.mrf.mxu0
        %1331 = vdwg.mxu0
        %1332 = vmatpush.bf16.msra.mxu0 0
        %1333 = vmatpush.bf16.msra.mxu0 0
        %1334 = vmatpush.bf16.msra.mxu0 0
        %1335 = vmatpush.bf16.msra.mxu0 0
        %1336 = vmatpush.bf16.msra.mxu0 0
        %1337 = vmatpush.bf16.msra.mxu0 0
        %1338 = vmatpush.bf16.msra.mxu0 0
        %1339 = vmatpush.bf16.msra.mxu0 %v1314
        %1340 = vmatmul.bf16.gmra.mxu0 %v1308
        %v1341 = vpop.f32.mrf.mxu0
        %v1342 = vadd.f32 0.0, %v1341
        %v1343 = vpop.f32.mrf.mxu0
        %1344 = vdwg.mxu0
        %1345 = vmatpush.bf16.msra.mxu0 0
        %1346 = vmatpush.bf16.msra.mxu0 0
        %1347 = vmatpush.bf16.msra.mxu0 0
        %1348 = vmatpush.bf16.msra.mxu0 0
        %1349 = vmatpush.bf16.msra.mxu0 0
        %1350 = vmatpush.bf16.msra.mxu0 0
        %1351 = vmatpush.bf16.msra.mxu0 0
        %1352 = vmatpush.bf16.msra.mxu0 %v1317
        %1353 = vmatmul.bf16.gmra.mxu0 %v1308
        %v1354 = vpop.f32.mrf.mxu0
        %v1355 = vadd.f32 0.0, %v1354
        %v1356 = vpop.f32.mrf.mxu0
        %1357 = vdwg.mxu0
        %v1358 = vadd.f32 %v1292, %v1329
        %v1359 = vadd.f32 %v1293, %v1342
        %v1360 = vadd.f32 %v1294, %v1355
        %s1361 = scalar_lea.vmem %s3, 20
        %v1362 = vld [vmem:[%s1361] sm:$0xf]
        %v1363 = vld [vmem:[#allocation2 + $0x4] sm:$0xff]
        %v1364 = vld [vmem:[#allocation2 + $0xc] sm:$0xff]
        %v1367 = vunpack.c.l.b16 %v1363
        %v1368 = vunpack.c.h.b16 %v1363
        %v1369 = vunpack.c.l.b16 %v1364
        %v1370 = vunpack.c.h.b16 %v1364
        %v1371 = vpack.c.b16 %v1367, %v1367
        %v1372 = vpack.c.b16 %v1368, %v1368
        %v1373 = vpack.c.b16 %v1369, %v1369
        %v1374 = vpack.c.b16 %v1370, %v1370
        %1375 = vrot.lane.b32.xlu0 %v1371, 127
        %v1376 = vpop.permute.xlu0 %1375
        %1377 = vrot.lane.b32.xlu0 %v1372, 127
        %v1378 = vpop.permute.xlu0 %1377
        %1379 = vrot.lane.b32.xlu0 %v1373, 127
        %v1380 = vpop.permute.xlu0 %1379
        %1381 = vrot.lane.b32.xlu0 %v1374, 127
        %v1382 = vpop.permute.xlu0 %1381
        %v1383 = vsel %vm699, %v1376, %v1378
        %v1384 = vsel %vm699, %v1378, %v1380
        %v1385 = vsel %vm699, %v1380, %v1382
        %v1387 = vsel %vm1046, %v1362, 0
        %v1390 = vsel %vm1050, %v1383, 0
        %v1393 = vsel %vm1050, %v1384, 0
        %v1396 = vsel %vm1050, %v1385, 0
        %1398 = vmatpush.bf16.msra.mxu0 0
        %1399 = vmatpush.bf16.msra.mxu0 0
        %1400 = vmatpush.bf16.msra.mxu0 0
        %1401 = vmatpush.bf16.msra.mxu0 0
        %1402 = vmatpush.bf16.msra.mxu0 0
        %1403 = vmatpush.bf16.msra.mxu0 0
        %1404 = vmatpush.bf16.msra.mxu0 0
        %1405 = vmatpush.bf16.msra.mxu0 %v1390
        %1406 = vmatmul.bf16.gmra.mxu0 %v1387
        %v1407 = vpop.f32.mrf.mxu0
        %v1408 = vadd.f32 0.0, %v1407
        %v1409 = vpop.f32.mrf.mxu0
        %1410 = vdwg.mxu0
        %1411 = vmatpush.bf16.msra.mxu0 0
        %1412 = vmatpush.bf16.msra.mxu0 0
        %1413 = vmatpush.bf16.msra.mxu0 0
        %1414 = vmatpush.bf16.msra.mxu0 0
        %1415 = vmatpush.bf16.msra.mxu0 0
        %1416 = vmatpush.bf16.msra.mxu0 0
        %1417 = vmatpush.bf16.msra.mxu0 0
        %1418 = vmatpush.bf16.msra.mxu0 %v1393
        %1419 = vmatmul.bf16.gmra.mxu0 %v1387
        %v1420 = vpop.f32.mrf.mxu0
        %v1421 = vadd.f32 0.0, %v1420
        %v1422 = vpop.f32.mrf.mxu0
        %1423 = vdwg.mxu0
        %1424 = vmatpush.bf16.msra.mxu0 0
        %1425 = vmatpush.bf16.msra.mxu0 0
        %1426 = vmatpush.bf16.msra.mxu0 0
        %1427 = vmatpush.bf16.msra.mxu0 0
        %1428 = vmatpush.bf16.msra.mxu0 0
        %1429 = vmatpush.bf16.msra.mxu0 0
        %1430 = vmatpush.bf16.msra.mxu0 0
        %1431 = vmatpush.bf16.msra.mxu0 %v1396
        %1432 = vmatmul.bf16.gmra.mxu0 %v1387
        %v1433 = vpop.f32.mrf.mxu0
        %v1434 = vadd.f32 0.0, %v1433
        %v1435 = vpop.f32.mrf.mxu0
        %1436 = vdwg.mxu0
        %v1437 = vadd.f32 %v1358, %v1408
        %v1438 = vadd.f32 %v1359, %v1421
        %v1439 = vadd.f32 %v1360, %v1434
        %s1440 = scalar_lea.vmem %s3, 24
        %v1441 = vld [vmem:[%s1440] sm:$0xf]
        %1442 = vrot.lane.b32.xlu0 %v1371, 111
        %v1443 = vpop.permute.xlu0 %1442
        %1444 = vrot.lane.b32.xlu0 %v1372, 111
        %v1445 = vpop.permute.xlu0 %1444
        %1446 = vrot.lane.b32.xlu0 %v1373, 111
        %v1447 = vpop.permute.xlu0 %1446
        %1448 = vrot.lane.b32.xlu0 %v1374, 111
        %v1449 = vpop.permute.xlu0 %1448
        %v1450 = vsel %vm778, %v1443, %v1445
        %v1451 = vsel %vm778, %v1445, %v1447
        %v1452 = vsel %vm778, %v1447, %v1449
        %v1454 = vsel %vm1046, %v1441, 0
        %v1457 = vsel %vm1050, %v1450, 0
        %v1460 = vsel %vm1050, %v1451, 0
        %v1463 = vsel %vm1050, %v1452, 0
        %1465 = vmatpush.bf16.msra.mxu0 0
        %1466 = vmatpush.bf16.msra.mxu0 0
        %1467 = vmatpush.bf16.msra.mxu0 0
        %1468 = vmatpush.bf16.msra.mxu0 0
        %1469 = vmatpush.bf16.msra.mxu0 0
        %1470 = vmatpush.bf16.msra.mxu0 0
        %1471 = vmatpush.bf16.msra.mxu0 0
        %1472 = vmatpush.bf16.msra.mxu0 %v1457
        %1473 = vmatmul.bf16.gmra.mxu0 %v1454
        %v1474 = vpop.f32.mrf.mxu0
        %v1475 = vadd.f32 0.0, %v1474
        %v1476 = vpop.f32.mrf.mxu0
        %1477 = vdwg.mxu0
        %1478 = vmatpush.bf16.msra.mxu0 0
        %1479 = vmatpush.bf16.msra.mxu0 0
        %1480 = vmatpush.bf16.msra.mxu0 0
        %1481 = vmatpush.bf16.msra.mxu0 0
        %1482 = vmatpush.bf16.msra.mxu0 0
        %1483 = vmatpush.bf16.msra.mxu0 0
        %1484 = vmatpush.bf16.msra.mxu0 0
        %1485 = vmatpush.bf16.msra.mxu0 %v1460
        %1486 = vmatmul.bf16.gmra.mxu0 %v1454
        %v1487 = vpop.f32.mrf.mxu0
        %v1488 = vadd.f32 0.0, %v1487
        %v1489 = vpop.f32.mrf.mxu0
        %1490 = vdwg.mxu0
        %1491 = vmatpush.bf16.msra.mxu0 0
        %1492 = vmatpush.bf16.msra.mxu0 0
        %1493 = vmatpush.bf16.msra.mxu0 0
        %1494 = vmatpush.bf16.msra.mxu0 0
        %1495 = vmatpush.bf16.msra.mxu0 0
        %1496 = vmatpush.bf16.msra.mxu0 0
        %1497 = vmatpush.bf16.msra.mxu0 0
        %1498 = vmatpush.bf16.msra.mxu0 %v1463
        %1499 = vmatmul.bf16.gmra.mxu0 %v1454
        %v1500 = vpop.f32.mrf.mxu0
        %v1501 = vadd.f32 0.0, %v1500
        %v1502 = vpop.f32.mrf.mxu0
        %1503 = vdwg.mxu0
        %v1504 = vadd.f32 %v1437, %v1475
        %v1505 = vadd.f32 %v1438, %v1488
        %v1506 = vadd.f32 %v1439, %v1501
        %s1507 = scalar_lea.vmem %s3, 28
        %v1508 = vld [vmem:[%s1507] sm:$0xf]
        %1509 = vrot.lane.b32.xlu0 %v1371, 110
        %v1510 = vpop.permute.xlu0 %1509
        %1511 = vrot.lane.b32.xlu0 %v1372, 110
        %v1512 = vpop.permute.xlu0 %1511
        %1513 = vrot.lane.b32.xlu0 %v1373, 110
        %v1514 = vpop.permute.xlu0 %1513
        %1515 = vrot.lane.b32.xlu0 %v1374, 110
        %v1516 = vpop.permute.xlu0 %1515
        %v1517 = vsel %vm857, %v1510, %v1512
        %v1518 = vsel %vm857, %v1512, %v1514
        %v1519 = vsel %vm857, %v1514, %v1516
        %v1521 = vsel %vm1046, %v1508, 0
        %v1524 = vsel %vm1050, %v1517, 0
        %v1527 = vsel %vm1050, %v1518, 0
        %v1530 = vsel %vm1050, %v1519, 0
        %1532 = vmatpush.bf16.msra.mxu0 0
        %1533 = vmatpush.bf16.msra.mxu0 0
        %1534 = vmatpush.bf16.msra.mxu0 0
        %1535 = vmatpush.bf16.msra.mxu0 0
        %1536 = vmatpush.bf16.msra.mxu0 0
        %1537 = vmatpush.bf16.msra.mxu0 0
        %1538 = vmatpush.bf16.msra.mxu0 0
        %1539 = vmatpush.bf16.msra.mxu0 %v1524
        %1540 = vmatmul.bf16.gmra.mxu0 %v1521
        %v1541 = vpop.f32.mrf.mxu0
        %v1542 = vadd.f32 0.0, %v1541
        %v1543 = vpop.f32.mrf.mxu0
        %1544 = vdwg.mxu0
        %1545 = vmatpush.bf16.msra.mxu0 0
        %1546 = vmatpush.bf16.msra.mxu0 0
        %1547 = vmatpush.bf16.msra.mxu0 0
        %1548 = vmatpush.bf16.msra.mxu0 0
        %1549 = vmatpush.bf16.msra.mxu0 0
        %1550 = vmatpush.bf16.msra.mxu0 0
        %1551 = vmatpush.bf16.msra.mxu0 0
        %1552 = vmatpush.bf16.msra.mxu0 %v1527
        %1553 = vmatmul.bf16.gmra.mxu0 %v1521
        %v1554 = vpop.f32.mrf.mxu0
        %v1555 = vadd.f32 0.0, %v1554
        %v1556 = vpop.f32.mrf.mxu0
        %1557 = vdwg.mxu0
        %1558 = vmatpush.bf16.msra.mxu0 0
        %1559 = vmatpush.bf16.msra.mxu0 0
        %1560 = vmatpush.bf16.msra.mxu0 0
        %1561 = vmatpush.bf16.msra.mxu0 0
        %1562 = vmatpush.bf16.msra.mxu0 0
        %1563 = vmatpush.bf16.msra.mxu0 0
        %1564 = vmatpush.bf16.msra.mxu0 0
        %1565 = vmatpush.bf16.msra.mxu0 %v1530
        %1566 = vmatmul.bf16.gmra.mxu0 %v1521
        %v1567 = vpop.f32.mrf.mxu0
        %v1568 = vadd.f32 0.0, %v1567
        %v1569 = vpop.f32.mrf.mxu0
        %1570 = vdwg.mxu0
        %v1571 = vadd.f32 %v1504, %v1542
        %v1572 = vadd.f32 %v1505, %v1555
        %v1573 = vadd.f32 %v1506, %v1568
        %s1574 = scalar_lea.vmem %s3, 32
        %v1575 = vld [vmem:[%s1574] sm:$0xf]
        %1576 = vrot.lane.b32.xlu0 %v1371, 109
        %v1577 = vpop.permute.xlu0 %1576
        %1578 = vrot.lane.b32.xlu0 %v1372, 109
        %v1579 = vpop.permute.xlu0 %1578
        %1580 = vrot.lane.b32.xlu0 %v1373, 109
        %v1581 = vpop.permute.xlu0 %1580
        %1582 = vrot.lane.b32.xlu0 %v1374, 109
        %v1583 = vpop.permute.xlu0 %1582
        %v1584 = vsel %vm936, %v1577, %v1579
        %v1585 = vsel %vm936, %v1579, %v1581
        %v1586 = vsel %vm936, %v1581, %v1583
        %v1588 = vsel %vm1046, %v1575, 0
        %v1591 = vsel %vm1050, %v1584, 0
        %v1594 = vsel %vm1050, %v1585, 0
        %v1597 = vsel %vm1050, %v1586, 0
        %1599 = vmatpush.bf16.msra.mxu0 0
        %1600 = vmatpush.bf16.msra.mxu0 0
        %1601 = vmatpush.bf16.msra.mxu0 0
        %1602 = vmatpush.bf16.msra.mxu0 0
        %1603 = vmatpush.bf16.msra.mxu0 0
        %1604 = vmatpush.bf16.msra.mxu0 0
        %1605 = vmatpush.bf16.msra.mxu0 0
        %1606 = vmatpush.bf16.msra.mxu0 %v1591
        %1607 = vmatmul.bf16.gmra.mxu0 %v1588
        %v1608 = vpop.f32.mrf.mxu0
        %v1609 = vadd.f32 0.0, %v1608
        %v1610 = vpop.f32.mrf.mxu0
        %1611 = vdwg.mxu0
        %1612 = vmatpush.bf16.msra.mxu0 0
        %1613 = vmatpush.bf16.msra.mxu0 0
        %1614 = vmatpush.bf16.msra.mxu0 0
        %1615 = vmatpush.bf16.msra.mxu0 0
        %1616 = vmatpush.bf16.msra.mxu0 0
        %1617 = vmatpush.bf16.msra.mxu0 0
        %1618 = vmatpush.bf16.msra.mxu0 0
        %1619 = vmatpush.bf16.msra.mxu0 %v1594
        %1620 = vmatmul.bf16.gmra.mxu0 %v1588
        %v1621 = vpop.f32.mrf.mxu0
        %v1622 = vadd.f32 0.0, %v1621
        %v1623 = vpop.f32.mrf.mxu0
        %1624 = vdwg.mxu0
        %1625 = vmatpush.bf16.msra.mxu0 0
        %1626 = vmatpush.bf16.msra.mxu0 0
        %1627 = vmatpush.bf16.msra.mxu0 0
        %1628 = vmatpush.bf16.msra.mxu0 0
        %1629 = vmatpush.bf16.msra.mxu0 0
        %1630 = vmatpush.bf16.msra.mxu0 0
        %1631 = vmatpush.bf16.msra.mxu0 0
        %1632 = vmatpush.bf16.msra.mxu0 %v1597
        %1633 = vmatmul.bf16.gmra.mxu0 %v1588
        %v1634 = vpop.f32.mrf.mxu0
        %v1635 = vadd.f32 0.0, %v1634
        %v1636 = vpop.f32.mrf.mxu0
        %1637 = vdwg.mxu0
        %v1638 = vadd.f32 %v1571, %v1609
        %v1639 = vadd.f32 %v1572, %v1622
        %v1640 = vadd.f32 %v1573, %v1635
        %v1641 = vld [vmem:[%s4] sm:$0xff]
        %1643 = vset.pattern.permute.xlu0 0
        %1644 = vperm.xlu0 %1643, %v1641
        %v1645 = vpop.permute.xlu0 %1644
        %v1647 = vadd.f32 %v1638, %v1645
        %v1648 = vadd.f32 %v1639, %v1645
        %v1649 = vadd.f32 %v1640, %v1645
        %v1650 = vmax.f32 %v1647, 0.0
        %v1651 = vmax.f32 %v1648, 0.0
        %v1652 = vmax.f32 %v1649, 0.0
        %v1653 = vmul.f32 %v1650, %v1007
        %v1654 = vmul.f32 %v1651, %v1008
        %v1655 = vmul.f32 %v1652, %v1009
        %v1656 = vpack.c.bf16 %v1654, %v1653
        %v1657 = vpack.c.bf16 %v1655, %v1655
        %1658 = vst [vmem:[#allocation3 + $0x4] sm:$0xff] %v1656
        %1659 = vst [vmem:[#allocation3 + $0xc] sm:$0xf] %v1657
        %v1660 = vld [vmem:[%s5] sm:$0xf]
        %v1661 = vld [vmem:[#allocation3] sm:$0xff]
        %v1662 = vld [vmem:[#allocation3 + $0x8] sm:$0xff]
        %s1663 = scalar_lea.vmem %s5, 4
        %v1664 = vld [vmem:[%s1663] sm:$0xf]
        %v1667 = vunpack.c.l.b16 %v1661
        %v1668 = vunpack.c.h.b16 %v1661
        %v1669 = vunpack.c.l.b16 %v1662
        %v1670 = vunpack.c.h.b16 %v1662
        %v1671 = vpack.c.b16 %v1667, %v1667
        %v1672 = vpack.c.b16 %v1668, %v1668
        %v1673 = vpack.c.b16 %v1669, %v1669
        %v1674 = vpack.c.b16 %v1670, %v1670
        %1675 = vrot.lane.b32.xlu0 %v1671, 18
        %v1676 = vpop.permute.xlu0 %1675
        %1677 = vrot.lane.b32.xlu0 %v1672, 18
        %v1678 = vpop.permute.xlu0 %1677
        %1679 = vrot.lane.b32.xlu0 %v1673, 18
        %v1680 = vpop.permute.xlu0 %1679
        %1681 = vrot.lane.b32.xlu0 %v1674, 18
        %v1682 = vpop.permute.xlu0 %1681
        %v1683 = vsel %vm332, %v1676, %v1678
        %v1684 = vsel %vm332, %v1678, %v1680
        %v1685 = vsel %vm332, %v1680, %v1682
        %v1687 = vsel %vm1046, %v1664, 0
        %v1690 = vsel %vm1050, %v1683, 0
        %v1693 = vsel %vm1050, %v1684, 0
        %v1696 = vsel %vm1050, %v1685, 0
        %1698 = vmatpush.bf16.msra.mxu0 0
        %1699 = vmatpush.bf16.msra.mxu0 0
        %1700 = vmatpush.bf16.msra.mxu0 0
        %1701 = vmatpush.bf16.msra.mxu0 0
        %1702 = vmatpush.bf16.msra.mxu0 0
        %1703 = vmatpush.bf16.msra.mxu0 0
        %1704 = vmatpush.bf16.msra.mxu0 0
        %1705 = vmatpush.bf16.msra.mxu0 %v1690
        %1706 = vmatmul.bf16.gmra.mxu0 %v1687
        %v1707 = vpop.f32.mrf.mxu0
        %v1708 = vadd.f32 0.0, %v1707
        %v1709 = vpop.f32.mrf.mxu0
        %1710 = vdwg.mxu0
        %1711 = vmatpush.bf16.msra.mxu0 0
        %1712 = vmatpush.bf16.msra.mxu0 0
        %1713 = vmatpush.bf16.msra.mxu0 0
        %1714 = vmatpush.bf16.msra.mxu0 0
        %1715 = vmatpush.bf16.msra.mxu0 0
        %1716 = vmatpush.bf16.msra.mxu0 0
        %1717 = vmatpush.bf16.msra.mxu0 0
        %1718 = vmatpush.bf16.msra.mxu0 %v1693
        %1719 = vmatmul.bf16.gmra.mxu0 %v1687
        %v1720 = vpop.f32.mrf.mxu0
        %v1721 = vadd.f32 0.0, %v1720
        %v1722 = vpop.f32.mrf.mxu0
        %1723 = vdwg.mxu0
        %1724 = vmatpush.bf16.msra.mxu0 0
        %1725 = vmatpush.bf16.msra.mxu0 0
        %1726 = vmatpush.bf16.msra.mxu0 0
        %1727 = vmatpush.bf16.msra.mxu0 0
        %1728 = vmatpush.bf16.msra.mxu0 0
        %1729 = vmatpush.bf16.msra.mxu0 0
        %1730 = vmatpush.bf16.msra.mxu0 0
        %1731 = vmatpush.bf16.msra.mxu0 %v1696
        %1732 = vmatmul.bf16.gmra.mxu0 %v1687
        %v1733 = vpop.f32.mrf.mxu0
        %v1734 = vadd.f32 0.0, %v1733
        %v1735 = vpop.f32.mrf.mxu0
        %1736 = vdwg.mxu0
        %1737 = vrot.lane.b32.xlu0 %v1671, 19
        %v1738 = vpop.permute.xlu0 %1737
        %1739 = vrot.lane.b32.xlu0 %v1672, 19
        %v1740 = vpop.permute.xlu0 %1739
        %1741 = vrot.lane.b32.xlu0 %v1673, 19
        %v1742 = vpop.permute.xlu0 %1741
        %1743 = vrot.lane.b32.xlu0 %v1674, 19
        %v1744 = vpop.permute.xlu0 %1743
        %v1745 = vsel %vm406, %v1738, %v1740
        %v1746 = vsel %vm406, %v1740, %v1742
        %v1747 = vsel %vm406, %v1742, %v1744
        %v1749 = vsel %vm1046, %v1660, 0
        %v1752 = vsel %vm1050, %v1745, 0
        %v1755 = vsel %vm1050, %v1746, 0
        %v1758 = vsel %vm1050, %v1747, 0
        %1760 = vmatpush.bf16.msra.mxu0 0
        %1761 = vmatpush.bf16.msra.mxu0 0
        %1762 = vmatpush.bf16.msra.mxu0 0
        %1763 = vmatpush.bf16.msra.mxu0 0
        %1764 = vmatpush.bf16.msra.mxu0 0
        %1765 = vmatpush.bf16.msra.mxu0 0
        %1766 = vmatpush.bf16.msra.mxu0 0
        %1767 = vmatpush.bf16.msra.mxu0 %v1752
        %1768 = vmatmul.bf16.gmra.mxu0 %v1749
        %v1769 = vpop.f32.mrf.mxu0
        %v1770 = vadd.f32 %v1708, %v1769
        %v1771 = vpop.f32.mrf.mxu0
        %1772 = vdwg.mxu0
        %1773 = vmatpush.bf16.msra.mxu0 0
        %1774 = vmatpush.bf16.msra.mxu0 0
        %1775 = vmatpush.bf16.msra.mxu0 0
        %1776 = vmatpush.bf16.msra.mxu0 0
        %1777 = vmatpush.bf16.msra.mxu0 0
        %1778 = vmatpush.bf16.msra.mxu0 0
        %1779 = vmatpush.bf16.msra.mxu0 0
        %1780 = vmatpush.bf16.msra.mxu0 %v1755
        %1781 = vmatmul.bf16.gmra.mxu0 %v1749
        %v1782 = vpop.f32.mrf.mxu0
        %v1783 = vadd.f32 %v1721, %v1782
        %v1784 = vpop.f32.mrf.mxu0
        %1785 = vdwg.mxu0
        %1786 = vmatpush.bf16.msra.mxu0 0
        %1787 = vmatpush.bf16.msra.mxu0 0
        %1788 = vmatpush.bf16.msra.mxu0 0
        %1789 = vmatpush.bf16.msra.mxu0 0
        %1790 = vmatpush.bf16.msra.mxu0 0
        %1791 = vmatpush.bf16.msra.mxu0 0
        %1792 = vmatpush.bf16.msra.mxu0 0
        %1793 = vmatpush.bf16.msra.mxu0 %v1758
        %1794 = vmatmul.bf16.gmra.mxu0 %v1749
        %v1795 = vpop.f32.mrf.mxu0
        %v1796 = vadd.f32 %v1734, %v1795
        %v1797 = vpop.f32.mrf.mxu0
        %1798 = vdwg.mxu0
        %s1799 = scalar_lea.vmem %s5, 8
        %v1800 = vld [vmem:[%s1799] sm:$0xf]
        %1801 = vrot.lane.b32.xlu0 %v1671, 17
        %v1802 = vpop.permute.xlu0 %1801
        %1803 = vrot.lane.b32.xlu0 %v1672, 17
        %v1804 = vpop.permute.xlu0 %1803
        %1805 = vrot.lane.b32.xlu0 %v1673, 17
        %v1806 = vpop.permute.xlu0 %1805
        %1807 = vrot.lane.b32.xlu0 %v1674, 17
        %v1808 = vpop.permute.xlu0 %1807
        %v1809 = vsel %vm482, %v1802, %v1804
        %v1810 = vsel %vm482, %v1804, %v1806
        %v1811 = vsel %vm482, %v1806, %v1808
        %v1813 = vsel %vm1046, %v1800, 0
        %v1816 = vsel %vm1050, %v1809, 0
        %v1819 = vsel %vm1050, %v1810, 0
        %v1822 = vsel %vm1050, %v1811, 0
        %1824 = vmatpush.bf16.msra.mxu0 0
        %1825 = vmatpush.bf16.msra.mxu0 0
        %1826 = vmatpush.bf16.msra.mxu0 0
        %1827 = vmatpush.bf16.msra.mxu0 0
        %1828 = vmatpush.bf16.msra.mxu0 0
        %1829 = vmatpush.bf16.msra.mxu0 0
        %1830 = vmatpush.bf16.msra.mxu0 0
        %1831 = vmatpush.bf16.msra.mxu0 %v1816
        %1832 = vmatmul.bf16.gmra.mxu0 %v1813
        %v1833 = vpop.f32.mrf.mxu0
        %v1834 = vadd.f32 0.0, %v1833
        %v1835 = vpop.f32.mrf.mxu0
        %1836 = vdwg.mxu0
        %1837 = vmatpush.bf16.msra.mxu0 0
        %1838 = vmatpush.bf16.msra.mxu0 0
        %1839 = vmatpush.bf16.msra.mxu0 0
        %1840 = vmatpush.bf16.msra.mxu0 0
        %1841 = vmatpush.bf16.msra.mxu0 0
        %1842 = vmatpush.bf16.msra.mxu0 0
        %1843 = vmatpush.bf16.msra.mxu0 0
        %1844 = vmatpush.bf16.msra.mxu0 %v1819
        %1845 = vmatmul.bf16.gmra.mxu0 %v1813
        %v1846 = vpop.f32.mrf.mxu0
        %v1847 = vadd.f32 0.0, %v1846
        %v1848 = vpop.f32.mrf.mxu0
        %1849 = vdwg.mxu0
        %1850 = vmatpush.bf16.msra.mxu0 0
        %1851 = vmatpush.bf16.msra.mxu0 0
        %1852 = vmatpush.bf16.msra.mxu0 0
        %1853 = vmatpush.bf16.msra.mxu0 0
        %1854 = vmatpush.bf16.msra.mxu0 0
        %1855 = vmatpush.bf16.msra.mxu0 0
        %1856 = vmatpush.bf16.msra.mxu0 0
        %1857 = vmatpush.bf16.msra.mxu0 %v1822
        %1858 = vmatmul.bf16.gmra.mxu0 %v1813
        %v1859 = vpop.f32.mrf.mxu0
        %v1860 = vadd.f32 0.0, %v1859
        %v1861 = vpop.f32.mrf.mxu0
        %1862 = vdwg.mxu0
        %v1863 = vadd.f32 %v1770, %v1834
        %v1864 = vadd.f32 %v1783, %v1847
        %v1865 = vadd.f32 %v1796, %v1860
        %s1866 = scalar_lea.vmem %s5, 12
        %v1867 = vld [vmem:[%s1866] sm:$0xf]
        %1868 = vrot.lane.b32.xlu0 %v1671, 1
        %v1869 = vpop.permute.xlu0 %1868
        %1870 = vrot.lane.b32.xlu0 %v1672, 1
        %v1871 = vpop.permute.xlu0 %1870
        %1872 = vrot.lane.b32.xlu0 %v1673, 1
        %v1873 = vpop.permute.xlu0 %1872
        %1874 = vrot.lane.b32.xlu0 %v1674, 1
        %v1875 = vpop.permute.xlu0 %1874
        %v1876 = vsel %vm561, %v1869, %v1871
        %v1877 = vsel %vm561, %v1871, %v1873
        %v1878 = vsel %vm561, %v1873, %v1875
        %v1880 = vsel %vm1046, %v1867, 0
        %v1883 = vsel %vm1050, %v1876, 0
        %v1886 = vsel %vm1050, %v1877, 0
        %v1889 = vsel %vm1050, %v1878, 0
        %1891 = vmatpush.bf16.msra.mxu0 0
        %1892 = vmatpush.bf16.msra.mxu0 0
        %1893 = vmatpush.bf16.msra.mxu0 0
        %1894 = vmatpush.bf16.msra.mxu0 0
        %1895 = vmatpush.bf16.msra.mxu0 0
        %1896 = vmatpush.bf16.msra.mxu0 0
        %1897 = vmatpush.bf16.msra.mxu0 0
        %1898 = vmatpush.bf16.msra.mxu0 %v1883
        %1899 = vmatmul.bf16.gmra.mxu0 %v1880
        %v1900 = vpop.f32.mrf.mxu0
        %v1901 = vadd.f32 0.0, %v1900
        %v1902 = vpop.f32.mrf.mxu0
        %1903 = vdwg.mxu0
        %1904 = vmatpush.bf16.msra.mxu0 0
        %1905 = vmatpush.bf16.msra.mxu0 0
        %1906 = vmatpush.bf16.msra.mxu0 0
        %1907 = vmatpush.bf16.msra.mxu0 0
        %1908 = vmatpush.bf16.msra.mxu0 0
        %1909 = vmatpush.bf16.msra.mxu0 0
        %1910 = vmatpush.bf16.msra.mxu0 0
        %1911 = vmatpush.bf16.msra.mxu0 %v1886
        %1912 = vmatmul.bf16.gmra.mxu0 %v1880
        %v1913 = vpop.f32.mrf.mxu0
        %v1914 = vadd.f32 0.0, %v1913
        %v1915 = vpop.f32.mrf.mxu0
        %1916 = vdwg.mxu0
        %1917 = vmatpush.bf16.msra.mxu0 0
        %1918 = vmatpush.bf16.msra.mxu0 0
        %1919 = vmatpush.bf16.msra.mxu0 0
        %1920 = vmatpush.bf16.msra.mxu0 0
        %1921 = vmatpush.bf16.msra.mxu0 0
        %1922 = vmatpush.bf16.msra.mxu0 0
        %1923 = vmatpush.bf16.msra.mxu0 0
        %1924 = vmatpush.bf16.msra.mxu0 %v1889
        %1925 = vmatmul.bf16.gmra.mxu0 %v1880
        %v1926 = vpop.f32.mrf.mxu0
        %v1927 = vadd.f32 0.0, %v1926
        %v1928 = vpop.f32.mrf.mxu0
        %1929 = vdwg.mxu0
        %v1930 = vadd.f32 %v1863, %v1901
        %v1931 = vadd.f32 %v1864, %v1914
        %v1932 = vadd.f32 %v1865, %v1927
        %s1933 = scalar_lea.vmem %s5, 16
        %v1934 = vld [vmem:[%s1933] sm:$0xf]
        %v1935 = vld [vmem:[#allocation3 + $0x4] sm:$0xff]
        %v1936 = vld [vmem:[#allocation3 + $0xc] sm:$0xf]
        %v1939 = vunpack.c.l.b16 %v1935
        %v1940 = vunpack.c.h.b16 %v1935
        %v1941 = vunpack.c.l.b16 %v1936
        %v1942 = vpack.c.b16 %v1939, %v1939
        %v1943 = vpack.c.b16 %v1940, %v1940
        %v1944 = vpack.c.b16 %v1941, %v1941
        %v1946 = vsel %vm1046, %v1934, 0
        %v1949 = vsel %vm1050, %v1942, 0
        %v1952 = vsel %vm1050, %v1943, 0
        %v1955 = vsel %vm1050, %v1944, 0
        %1957 = vmatpush.bf16.msra.mxu0 0
        %1958 = vmatpush.bf16.msra.mxu0 0
        %1959 = vmatpush.bf16.msra.mxu0 0
        %1960 = vmatpush.bf16.msra.mxu0 0
        %1961 = vmatpush.bf16.msra.mxu0 0
        %1962 = vmatpush.bf16.msra.mxu0 0
        %1963 = vmatpush.bf16.msra.mxu0 0
        %1964 = vmatpush.bf16.msra.mxu0 %v1949
        %1965 = vmatmul.bf16.gmra.mxu0 %v1946
        %v1966 = vpop.f32.mrf.mxu0
        %v1967 = vadd.f32 0.0, %v1966
        %v1968 = vpop.f32.mrf.mxu0
        %1969 = vdwg.mxu0
        %1970 = vmatpush.bf16.msra.mxu0 0
        %1971 = vmatpush.bf16.msra.mxu0 0
        %1972 = vmatpush.bf16.msra.mxu0 0
        %1973 = vmatpush.bf16.msra.mxu0 0
        %1974 = vmatpush.bf16.msra.mxu0 0
        %1975 = vmatpush.bf16.msra.mxu0 0
        %1976 = vmatpush.bf16.msra.mxu0 0
        %1977 = vmatpush.bf16.msra.mxu0 %v1952
        %1978 = vmatmul.bf16.gmra.mxu0 %v1946
        %v1979 = vpop.f32.mrf.mxu0
        %v1980 = vadd.f32 0.0, %v1979
        %v1981 = vpop.f32.mrf.mxu0
        %1982 = vdwg.mxu0
        %1983 = vmatpush.bf16.msra.mxu0 0
        %1984 = vmatpush.bf16.msra.mxu0 0
        %1985 = vmatpush.bf16.msra.mxu0 0
        %1986 = vmatpush.bf16.msra.mxu0 0
        %1987 = vmatpush.bf16.msra.mxu0 0
        %1988 = vmatpush.bf16.msra.mxu0 0
        %1989 = vmatpush.bf16.msra.mxu0 0
        %1990 = vmatpush.bf16.msra.mxu0 %v1955
        %1991 = vmatmul.bf16.gmra.mxu0 %v1946
        %v1992 = vpop.f32.mrf.mxu0
        %v1993 = vadd.f32 0.0, %v1992
        %v1994 = vpop.f32.mrf.mxu0
        %1995 = vdwg.mxu0
        %v1996 = vadd.f32 %v1930, %v1967
        %v1997 = vadd.f32 %v1931, %v1980
        %v1998 = vadd.f32 %v1932, %v1993
        %s1999 = scalar_lea.vmem %s5, 20
        %v2000 = vld [vmem:[%s1999] sm:$0xf]
        %v2001 = vld [vmem:[#allocation3 + $0x4] sm:$0xff]
        %v2002 = vld [vmem:[#allocation3 + $0xc] sm:$0xff]
        %v2005 = vunpack.c.l.b16 %v2001
        %v2006 = vunpack.c.h.b16 %v2001
        %v2007 = vunpack.c.l.b16 %v2002
        %v2008 = vunpack.c.h.b16 %v2002
        %v2009 = vpack.c.b16 %v2005, %v2005
        %v2010 = vpack.c.b16 %v2006, %v2006
        %v2011 = vpack.c.b16 %v2007, %v2007
        %v2012 = vpack.c.b16 %v2008, %v2008
        %2013 = vrot.lane.b32.xlu0 %v2009, 127
        %v2014 = vpop.permute.xlu0 %2013
        %2015 = vrot.lane.b32.xlu0 %v2010, 127
        %v2016 = vpop.permute.xlu0 %2015
        %2017 = vrot.lane.b32.xlu0 %v2011, 127
        %v2018 = vpop.permute.xlu0 %2017
        %2019 = vrot.lane.b32.xlu0 %v2012, 127
        %v2020 = vpop.permute.xlu0 %2019
        %v2021 = vsel %vm699, %v2014, %v2016
        %v2022 = vsel %vm699, %v2016, %v2018
        %v2023 = vsel %vm699, %v2018, %v2020
        %v2025 = vsel %vm1046, %v2000, 0
        %v2028 = vsel %vm1050, %v2021, 0
        %v2031 = vsel %vm1050, %v2022, 0
        %v2034 = vsel %vm1050, %v2023, 0
        %2036 = vmatpush.bf16.msra.mxu0 0
        %2037 = vmatpush.bf16.msra.mxu0 0
        %2038 = vmatpush.bf16.msra.mxu0 0
        %2039 = vmatpush.bf16.msra.mxu0 0
        %2040 = vmatpush.bf16.msra.mxu0 0
        %2041 = vmatpush.bf16.msra.mxu0 0
        %2042 = vmatpush.bf16.msra.mxu0 0
        %2043 = vmatpush.bf16.msra.mxu0 %v2028
        %2044 = vmatmul.bf16.gmra.mxu0 %v2025
        %v2045 = vpop.f32.mrf.mxu0
        %v2046 = vadd.f32 0.0, %v2045
        %v2047 = vpop.f32.mrf.mxu0
        %2048 = vdwg.mxu0
        %2049 = vmatpush.bf16.msra.mxu0 0
        %2050 = vmatpush.bf16.msra.mxu0 0
        %2051 = vmatpush.bf16.msra.mxu0 0
        %2052 = vmatpush.bf16.msra.mxu0 0
        %2053 = vmatpush.bf16.msra.mxu0 0
        %2054 = vmatpush.bf16.msra.mxu0 0
        %2055 = vmatpush.bf16.msra.mxu0 0
        %2056 = vmatpush.bf16.msra.mxu0 %v2031
        %2057 = vmatmul.bf16.gmra.mxu0 %v2025
        %v2058 = vpop.f32.mrf.mxu0
        %v2059 = vadd.f32 0.0, %v2058
        %v2060 = vpop.f32.mrf.mxu0
        %2061 = vdwg.mxu0
        %2062 = vmatpush.bf16.msra.mxu0 0
        %2063 = vmatpush.bf16.msra.mxu0 0
        %2064 = vmatpush.bf16.msra.mxu0 0
        %2065 = vmatpush.bf16.msra.mxu0 0
        %2066 = vmatpush.bf16.msra.mxu0 0
        %2067 = vmatpush.bf16.msra.mxu0 0
        %2068 = vmatpush.bf16.msra.mxu0 0
        %2069 = vmatpush.bf16.msra.mxu0 %v2034
        %2070 = vmatmul.bf16.gmra.mxu0 %v2025
        %v2071 = vpop.f32.mrf.mxu0
        %v2072 = vadd.f32 0.0, %v2071
        %v2073 = vpop.f32.mrf.mxu0
        %2074 = vdwg.mxu0
        %v2075 = vadd.f32 %v1996, %v2046
        %v2076 = vadd.f32 %v1997, %v2059
        %v2077 = vadd.f32 %v1998, %v2072
        %s2078 = scalar_lea.vmem %s5, 24
        %v2079 = vld [vmem:[%s2078] sm:$0xf]
        %2080 = vrot.lane.b32.xlu0 %v2009, 111
        %v2081 = vpop.permute.xlu0 %2080
        %2082 = vrot.lane.b32.xlu0 %v2010, 111
        %v2083 = vpop.permute.xlu0 %2082
        %2084 = vrot.lane.b32.xlu0 %v2011, 111
        %v2085 = vpop.permute.xlu0 %2084
        %2086 = vrot.lane.b32.xlu0 %v2012, 111
        %v2087 = vpop.permute.xlu0 %2086
        %v2088 = vsel %vm778, %v2081, %v2083
        %v2089 = vsel %vm778, %v2083, %v2085
        %v2090 = vsel %vm778, %v2085, %v2087
        %v2092 = vsel %vm1046, %v2079, 0
        %v2095 = vsel %vm1050, %v2088, 0
        %v2098 = vsel %vm1050, %v2089, 0
        %v2101 = vsel %vm1050, %v2090, 0
        %2103 = vmatpush.bf16.msra.mxu0 0
        %2104 = vmatpush.bf16.msra.mxu0 0
        %2105 = vmatpush.bf16.msra.mxu0 0
        %2106 = vmatpush.bf16.msra.mxu0 0
        %2107 = vmatpush.bf16.msra.mxu0 0
        %2108 = vmatpush.bf16.msra.mxu0 0
        %2109 = vmatpush.bf16.msra.mxu0 0
        %2110 = vmatpush.bf16.msra.mxu0 %v2095
        %2111 = vmatmul.bf16.gmra.mxu0 %v2092
        %v2112 = vpop.f32.mrf.mxu0
        %v2113 = vadd.f32 0.0, %v2112
        %v2114 = vpop.f32.mrf.mxu0
        %2115 = vdwg.mxu0
        %2116 = vmatpush.bf16.msra.mxu0 0
        %2117 = vmatpush.bf16.msra.mxu0 0
        %2118 = vmatpush.bf16.msra.mxu0 0
        %2119 = vmatpush.bf16.msra.mxu0 0
        %2120 = vmatpush.bf16.msra.mxu0 0
        %2121 = vmatpush.bf16.msra.mxu0 0
        %2122 = vmatpush.bf16.msra.mxu0 0
        %2123 = vmatpush.bf16.msra.mxu0 %v2098
        %2124 = vmatmul.bf16.gmra.mxu0 %v2092
        %v2125 = vpop.f32.mrf.mxu0
        %v2126 = vadd.f32 0.0, %v2125
        %v2127 = vpop.f32.mrf.mxu0
        %2128 = vdwg.mxu0
        %2129 = vmatpush.bf16.msra.mxu0 0
        %2130 = vmatpush.bf16.msra.mxu0 0
        %2131 = vmatpush.bf16.msra.mxu0 0
        %2132 = vmatpush.bf16.msra.mxu0 0
        %2133 = vmatpush.bf16.msra.mxu0 0
        %2134 = vmatpush.bf16.msra.mxu0 0
        %2135 = vmatpush.bf16.msra.mxu0 0
        %2136 = vmatpush.bf16.msra.mxu0 %v2101
        %2137 = vmatmul.bf16.gmra.mxu0 %v2092
        %v2138 = vpop.f32.mrf.mxu0
        %v2139 = vadd.f32 0.0, %v2138
        %v2140 = vpop.f32.mrf.mxu0
        %2141 = vdwg.mxu0
        %v2142 = vadd.f32 %v2075, %v2113
        %v2143 = vadd.f32 %v2076, %v2126
        %v2144 = vadd.f32 %v2077, %v2139
        %s2145 = scalar_lea.vmem %s5, 28
        %v2146 = vld [vmem:[%s2145] sm:$0xf]
        %2147 = vrot.lane.b32.xlu0 %v2009, 110
        %v2148 = vpop.permute.xlu0 %2147
        %2149 = vrot.lane.b32.xlu0 %v2010, 110
        %v2150 = vpop.permute.xlu0 %2149
        %2151 = vrot.lane.b32.xlu0 %v2011, 110
        %v2152 = vpop.permute.xlu0 %2151
        %2153 = vrot.lane.b32.xlu0 %v2012, 110
        %v2154 = vpop.permute.xlu0 %2153
        %v2155 = vsel %vm857, %v2148, %v2150
        %v2156 = vsel %vm857, %v2150, %v2152
        %v2157 = vsel %vm857, %v2152, %v2154
        %v2159 = vsel %vm1046, %v2146, 0
        %v2162 = vsel %vm1050, %v2155, 0
        %v2165 = vsel %vm1050, %v2156, 0
        %v2168 = vsel %vm1050, %v2157, 0
        %2170 = vmatpush.bf16.msra.mxu0 0
        %2171 = vmatpush.bf16.msra.mxu0 0
        %2172 = vmatpush.bf16.msra.mxu0 0
        %2173 = vmatpush.bf16.msra.mxu0 0
        %2174 = vmatpush.bf16.msra.mxu0 0
        %2175 = vmatpush.bf16.msra.mxu0 0
        %2176 = vmatpush.bf16.msra.mxu0 0
        %2177 = vmatpush.bf16.msra.mxu0 %v2162
        %2178 = vmatmul.bf16.gmra.mxu0 %v2159
        %v2179 = vpop.f32.mrf.mxu0
        %v2180 = vadd.f32 0.0, %v2179
        %v2181 = vpop.f32.mrf.mxu0
        %2182 = vdwg.mxu0
        %2183 = vmatpush.bf16.msra.mxu0 0
        %2184 = vmatpush.bf16.msra.mxu0 0
        %2185 = vmatpush.bf16.msra.mxu0 0
        %2186 = vmatpush.bf16.msra.mxu0 0
        %2187 = vmatpush.bf16.msra.mxu0 0
        %2188 = vmatpush.bf16.msra.mxu0 0
        %2189 = vmatpush.bf16.msra.mxu0 0
        %2190 = vmatpush.bf16.msra.mxu0 %v2165
        %2191 = vmatmul.bf16.gmra.mxu0 %v2159
        %v2192 = vpop.f32.mrf.mxu0
        %v2193 = vadd.f32 0.0, %v2192
        %v2194 = vpop.f32.mrf.mxu0
        %2195 = vdwg.mxu0
        %2196 = vmatpush.bf16.msra.mxu0 0
        %2197 = vmatpush.bf16.msra.mxu0 0
        %2198 = vmatpush.bf16.msra.mxu0 0
        %2199 = vmatpush.bf16.msra.mxu0 0
        %2200 = vmatpush.bf16.msra.mxu0 0
        %2201 = vmatpush.bf16.msra.mxu0 0
        %2202 = vmatpush.bf16.msra.mxu0 0
        %2203 = vmatpush.bf16.msra.mxu0 %v2168
        %2204 = vmatmul.bf16.gmra.mxu0 %v2159
        %v2205 = vpop.f32.mrf.mxu0
        %v2206 = vadd.f32 0.0, %v2205
        %v2207 = vpop.f32.mrf.mxu0
        %2208 = vdwg.mxu0
        %v2209 = vadd.f32 %v2142, %v2180
        %v2210 = vadd.f32 %v2143, %v2193
        %v2211 = vadd.f32 %v2144, %v2206
        %s2212 = scalar_lea.vmem %s5, 32
        %v2213 = vld [vmem:[%s2212] sm:$0xf]
        %2214 = vrot.lane.b32.xlu0 %v2009, 109
        %v2215 = vpop.permute.xlu0 %2214
        %2216 = vrot.lane.b32.xlu0 %v2010, 109
        %v2217 = vpop.permute.xlu0 %2216
        %2218 = vrot.lane.b32.xlu0 %v2011, 109
        %v2219 = vpop.permute.xlu0 %2218
        %2220 = vrot.lane.b32.xlu0 %v2012, 109
        %v2221 = vpop.permute.xlu0 %2220
        %v2222 = vsel %vm936, %v2215, %v2217
        %v2223 = vsel %vm936, %v2217, %v2219
        %v2224 = vsel %vm936, %v2219, %v2221
        %v2226 = vsel %vm1046, %v2213, 0
        %v2229 = vsel %vm1050, %v2222, 0
        %v2232 = vsel %vm1050, %v2223, 0
        %v2235 = vsel %vm1050, %v2224, 0
        %2237 = vmatpush.bf16.msra.mxu0 0
        %2238 = vmatpush.bf16.msra.mxu0 0
        %2239 = vmatpush.bf16.msra.mxu0 0
        %2240 = vmatpush.bf16.msra.mxu0 0
        %2241 = vmatpush.bf16.msra.mxu0 0
        %2242 = vmatpush.bf16.msra.mxu0 0
        %2243 = vmatpush.bf16.msra.mxu0 0
        %2244 = vmatpush.bf16.msra.mxu0 %v2229
        %2245 = vmatmul.bf16.gmra.mxu0 %v2226
        %v2246 = vpop.f32.mrf.mxu0
        %v2247 = vadd.f32 0.0, %v2246
        %v2248 = vpop.f32.mrf.mxu0
        %2249 = vdwg.mxu0
        %2250 = vmatpush.bf16.msra.mxu0 0
        %2251 = vmatpush.bf16.msra.mxu0 0
        %2252 = vmatpush.bf16.msra.mxu0 0
        %2253 = vmatpush.bf16.msra.mxu0 0
        %2254 = vmatpush.bf16.msra.mxu0 0
        %2255 = vmatpush.bf16.msra.mxu0 0
        %2256 = vmatpush.bf16.msra.mxu0 0
        %2257 = vmatpush.bf16.msra.mxu0 %v2232
        %2258 = vmatmul.bf16.gmra.mxu0 %v2226
        %v2259 = vpop.f32.mrf.mxu0
        %v2260 = vadd.f32 0.0, %v2259
        %v2261 = vpop.f32.mrf.mxu0
        %2262 = vdwg.mxu0
        %2263 = vmatpush.bf16.msra.mxu0 0
        %2264 = vmatpush.bf16.msra.mxu0 0
        %2265 = vmatpush.bf16.msra.mxu0 0
        %2266 = vmatpush.bf16.msra.mxu0 0
        %2267 = vmatpush.bf16.msra.mxu0 0
        %2268 = vmatpush.bf16.msra.mxu0 0
        %2269 = vmatpush.bf16.msra.mxu0 0
        %2270 = vmatpush.bf16.msra.mxu0 %v2235
        %2271 = vmatmul.bf16.gmra.mxu0 %v2226
        %v2272 = vpop.f32.mrf.mxu0
        %v2273 = vadd.f32 0.0, %v2272
        %v2274 = vpop.f32.mrf.mxu0
        %2275 = vdwg.mxu0
        %v2276 = vadd.f32 %v2209, %v2247
        %v2277 = vadd.f32 %v2210, %v2260
        %v2278 = vadd.f32 %v2211, %v2273
        %v2279 = vld [vmem:[%s6] sm:$0xff]
        %2281 = vset.pattern.permute.xlu0 0
        %2282 = vperm.xlu0 %2281, %v2279
        %v2283 = vpop.permute.xlu0 %2282
        %v2285 = vadd.f32 %v2276, %v2283
        %v2286 = vadd.f32 %v2277, %v2283
        %v2287 = vadd.f32 %v2278, %v2283
        %v2288 = vld [vmem:[#allocation2 + $0x4] sm:$0xff]
        %v2289 = vld [vmem:[#allocation2 + $0xc] sm:$0xf]
        %v2290 = vunpack.c.l.bf16 %v2288
        %v2291 = vunpack.c.h.bf16 %v2288
        %v2292 = vunpack.c.l.bf16 %v2289
        %v2293 = vadd.f32 %v2290, %v2285
        %v2294 = vadd.f32 %v2291, %v2286
        %v2295 = vadd.f32 %v2292, %v2287
        %v2296 = vmax.f32 %v2293, 0.0
        %v2297 = vmax.f32 %v2294, 0.0
        %v2298 = vmax.f32 %v2295, 0.0
        %2299 = vst [vmem:[%s298] sm:$0xff] %v2296
        %2300 = vst [vmem:[%s298 + $0x8] sm:$0xff] %v2297
        %2301 = vst [vmem:[%s298 + $0x10] sm:$0xff] %v2298
        %s2302 = sand.u32 %s203, 1
        %s2303 = scalar_lea.sflag [#allocation5], %s2302
        %s2304 = sand.u32 %s203, 1
        %s2305 = smul.addr %s2304, 24
        %s2306 = scalar_lea.vmem [#allocation4], %s2305
        // Predicated region
        $region53: #{tpu_custom_call.1} parent=51 // pred_check
          %p2307 = pneg %p213
        $region54: #{tpu_custom_call.1} parent=51 // pred_check_branch
          %2309 = sbr.rel (%p2307) target = $region56
        $region55: #{tpu_custom_call.1} parent=51 // pred_region
          %2311 = vsyncadd %s2303, 0
          %s2312 = smul.addr %s22, 3
          %s2313 = smul.addr %s2312, 8
          %s2314 = scalar_lea.hbm %s8, %s2313
          %s2316 = sshll.u32 %s2306, 4
          %s2317 = int_to_ptr.vmem [resolvable:$true] %s2316
          %s2318 = sshll.u32 %s2314, 4
          %s2319 = int_to_ptr.hbm [resolvable:$true] %s2318
          %2321 = dma.vmem_to_hbm [thread:$0]  %s2317, 384, %s2319, %s2303
        $region56: #{tpu_custom_call.1} parent=51 // pred_fallthru
          _
      $region52: #{tpu_custom_call.1} parent=5 // pred_fallthru
        _
      %p2322 = scmp.le.s32.totalorder 2, %s17
      // Predicated region
      $region57: #{tpu_custom_call.1} parent=5 // pred_check
        %p2323 = pneg %p2322
      $region58: #{tpu_custom_call.1} parent=5 // pred_check_branch
        %2325 = sbr.rel (%p2323) target = $region60
      $region59: #{tpu_custom_call.1} parent=5 // pred_region
        %s2326 = ssub.s32 %s17, 2
        // Predicated region
        $region61: #{tpu_custom_call.1} parent=59 // pred_check
          %p2327 = pneg %p219
        $region62: #{tpu_custom_call.1} parent=59 // pred_check_branch
          %2329 = sbr.rel (%p2327) target = $region64
        $region63: #{tpu_custom_call.1} parent=59 // pred_region
          %s2330 = sand.u32 %s204, 1
          %s2331 = scalar_lea.sflag [#allocation5], %s2330
          %s2332 = sand.u32 %s204, 1
          %s2333 = smul.addr %s2332, 24
          %s2334 = scalar_lea.vmem [#allocation4], %s2333
          %2336 = dma.done %s2331, 384
        $region64: #{tpu_custom_call.1} parent=59 // pred_fallthru
          _
      $region60: #{tpu_custom_call.1} parent=5 // pred_fallthru
        _
    $region6: #{tpu_custom_call.1} parent=1 // loop_footer
      %s21 = sadd.s32 1, %s17
    $region7: #{tpu_custom_call.1} parent=1 // loop_footer_branch
      %16 = sbr.rel target = $region3
    $region8: #{tpu_custom_call.1} parent=1 // loop_exit
      _
    %2337 = vsyncpa [#allocation5], 1
    %s2338 = scalar_lea.sflag [#allocation5], 1
    %2339 = vsyncpa %s2338, 1

</llo_original>
